<compile_context>
chip_gen: v7x
topology: tpu7x:2x2x1
jax: 0.10.0
libtpu: 0.0.40
codegen_flags: <defaults>
</compile_context>

<pallas_src>
import jax
import jax.numpy as jnp
import numpy as np
from jax import lax
from jax.experimental import pallas as pl
from jax.experimental.pallas import tpu as pltpu

KH, KW = 3, 3
SH, SW = 1, 2
PH, PW = 1, 2
CIN, COUT = 110, 166
CIN_P = 128    # contraction padded to one full lane tile (aligned MXU passes)
COUT_P = 256   # output channels padded to 2 lane tiles -> lane-dense, unmasked stores


def _round_up(x, m):
    return (x + m - 1) // m * m


def _make_kernel(TH, W_pad):
    M = TH * W_pad                  # output rows (oh, w) produced per grid step (mult of 8)
    EXT = M + 2 * W_pad + 8         # padded-input rows needed (2 extra kh taps + shift slack)

    def kernel(x_ref, wab_ref, wc_ref, b_ref, o_ref):
        # x_ref  : (Hp*W_pad, CIN_P)     whole padded NHWC image, (h, w) flattened
        # wab_ref: (6*CIN_P, COUT_P)     rows = [A0;A1;A2;B0;B1;B2]   (even-column weights)
        # wc_ref : (3*CIN_P, COUT_P)     rows = [C0;C1;C2]            (odd-column weights)
        # b_ref  : (1, COUT_P)
        # o_ref  : (M, 2*COUT_P)         lanes [:256] = even cols, [256:] = odd cols
        t = pl.program_id(1)
        # Invariant: W_pad % 8 == 0, hence TH*W_pad % 8 == 0 -> aligned sublane start.
        base = pl.multiple_of(t * (TH * W_pad), 8)
        ext = x_ref[pl.ds(base, EXT), :]                        # one aligned (EXT, 128) load

        # LHS column groups (each 128 lanes):
        #   kh = 0..2 :  x_pad[oh+kh, i]     -> aligned static slices (offset kh*W_pad)
        #   kh = 0..2 :  x_pad[oh+kh, i+1]   -> same slices shifted by +1 flattened row.
        # The +1 shift only wraps into the next image row for padded W columns, whose
        # outputs are trimmed in the wrapper.
        cols = [ext[kh * W_pad: kh * W_pad + M, :] for kh in range(KH)]
        cols += [ext[kh * W_pad + 1: kh * W_pad + 1 + M, :] for kh in range(KH)]
        L = jnp.concatenate(cols, axis=1)                       # (M, 6*128) K-fused LHS

        even = jnp.dot(L, wab_ref[...], preferred_element_type=jnp.float32)          # K=768
        odd = jnp.dot(L[:, KH * CIN_P:], wc_ref[...], preferred_element_type=jnp.float32)  # K=384

        b = b_ref[...]
        ve = even + b
        vo = odd + b
        # silu(v) = v*sigmoid(v) = 0.5*v*(1 + tanh(v/2))  (exact; tanh runs on the EUP slot)
        se = 0.5 * ve * (1.0 + jnp.tanh(0.5 * ve))
        so = 0.5 * vo * (1.0 + jnp.tanh(0.5 * vo))
        o_ref[:, :COUT_P] = jnp.maximum(se, 0.0)                # even output columns
        o_ref[:, COUT_P:] = jnp.maximum(so, 0.0)                # odd output columns

    return kernel


@jax.jit
def conv_transpose_silu_relu(x_nchw, weight, bias):
    """x_nchw: (N, CIN, H, W) f32; weight: (CIN, COUT, KH, KW); bias: (COUT,)."""
    N, C, H, W = x_nchw.shape
    assert C == CIN and W >= 2
    H_out = (H - 1) * SH - 2 * PH + KH          # == H
    W_out = (W - 1) * SW - 2 * PW + KW          # == 2W - 3

    # Stripe of TH output rows per grid step; target ~1024 (M = TH*W_pad) rows per step.
    W_pad = _round_up(W, 8)                     # aligned sublane stride per image row
    TH = min(_round_up(H_out, 8), max(8, (1024 // W_pad) // 8 * 8))
    n_h = -(-H_out // TH)
    H_out_pad = n_h * TH
    M = TH * W_pad
    Hp = H_out_pad + 3                          # 1 zero row on top + slack for EXT read

    # NCHW -> NHWC, zero-pad (H, W, C) -> (Hp, W_pad, CIN_P), flatten (h, w).
    x = jnp.transpose(x_nchw, (0, 2, 3, 1))
    x = jnp.pad(x, ((0, 0), (1, Hp - H - 1), (0, W_pad - W), (0, CIN_P - CIN)))
    x_flat = x.reshape(N, Hp * W_pad, CIN_P)

    # ConvTranspose2d with stride (1,2), padding (1,2):
    #   even output col 2i   :  sum_kh  x[oh+kh-1, i]  @ Wt[:, :, 2-kh, 2]   (A)
    #                                 + x[oh+kh-1, i+1]@ Wt[:, :, 2-kh, 0]   (B)
    #   odd  output col 2i+1 :  sum_kh  x[oh+kh-1, i+1]@ Wt[:, :, 2-kh, 1]   (C)
    w_kh = jnp.transpose(weight[:, :, ::-1, :], (2, 3, 0, 1))   # (KH, KW, CIN, COUT), kh flipped
    pad_w = ((0, 0), (0, CIN_P - CIN), (0, COUT_P - COUT))
    WA = jnp.pad(w_kh[:, 2], pad_w).reshape(KH * CIN_P, COUT_P)   # (384, 256)
    WB = jnp.pad(w_kh[:, 0], pad_w).reshape(KH * CIN_P, COUT_P)   # (384, 256)
    WC = jnp.pad(w_kh[:, 1], pad_w).reshape(KH * CIN_P, COUT_P)   # (384, 256)
    WAB = jnp.concatenate([WA, WB], axis=0)                       # (768, 256)
    b_pad = jnp.pad(bias, (0, COUT_P - COUT)).reshape(1, COUT_P)

    # Explicit VMEM budget (double-buffered input/output + weights + in-kernel temps).
    est_bytes = 4 * (
        2 * Hp * W_pad * CIN_P                                   # input block x2 bufs
        + 2 * (3 * KH * CIN_P * COUT_P + COUT_P)                 # weights + bias x2 bufs
        + 2 * M * 2 * COUT_P                                     # output block x2 bufs
        + (M + 2 * W_pad + 8) * CIN_P                            # ext temp
        + M * 2 * KH * CIN_P                                     # fused LHS
        + 4 * M * COUT_P)                                        # dot results + activations
    vmem_limit = int(min(max(2 * est_bytes, 32 * 2**20), 56 * 2**20))

    out = pl.pallas_call(
        _make_kernel(TH, W_pad),
        out_shape=jax.ShapeDtypeStruct((N, H_out_pad * W_pad, 2 * COUT_P), jnp.float32),
        grid_spec=pltpu.PrefetchScalarGridSpec(
            num_scalar_prefetch=0,
            grid=(N, n_h),
            in_specs=[
                pl.BlockSpec((None, Hp * W_pad, CIN_P), lambda n, t: (n, 0, 0)),
                pl.BlockSpec((2 * KH * CIN_P, COUT_P), lambda n, t: (0, 0)),
                pl.BlockSpec((KH * CIN_P, COUT_P), lambda n, t: (0, 0)),
                pl.BlockSpec((1, COUT_P), lambda n, t: (0, 0)),
            ],
            out_specs=pl.BlockSpec((None, M, 2 * COUT_P), lambda n, t: (n, t, 0)),
        ),
        compiler_params=pltpu.CompilerParams(
            dimension_semantics=("parallel", "parallel"),
            vmem_limit_bytes=vmem_limit),
    )(x_flat, WAB, WC, b_pad)

    # Free row-major reshape interleaves even/odd columns: (h, w, {even,odd}, c) -> (h, 2w, c).
    out = out.reshape(N, H_out_pad, 2 * W_pad, COUT_P)
    out = out[:, :H_out, :W_out, :COUT]
    return jnp.transpose(out, (0, 3, 1, 2))      # back to NCHW


def reference(x_nchw, weight, bias):
    # Pure-JAX reference: transposed conv via lhs dilation, then silu, then relu.
    w_flip = weight[:, :, ::-1, ::-1]                 # (CIN, COUT, KH, KW)
    w_oihw = jnp.transpose(w_flip, (1, 0, 2, 3))      # (COUT, CIN, KH, KW)
    y = lax.conv_general_dilated(
        x_nchw, w_oihw,
        window_strides=(1, 1),
        padding=[(KH - 1 - PH, KH - 1 - PH), (KW - 1 - PW, KW - 1 - PW)],
        lhs_dilation=(SH, SW),
        dimension_numbers=("NCHW", "OIHW", "NCHW"))
    y = y + bias.reshape(1, COUT, 1, 1)
    return jnp.maximum(y * jax.nn.sigmoid(y), 0.0)


if __name__ == "__main__":
    key = jax.random.PRNGKey(0)
    kx, kw_, kb = jax.random.split(key, 3)

    # Small spatial shape consistent with the module (channel counts fixed by __init__).
    N, H, W = 2, 16, 12
    x = jax.random.normal(kx, (N, CIN, H, W), jnp.float32)

    bound = 1.0 / np.sqrt(CIN * KH * KW)
    weight = jax.random.uniform(kw_, (CIN, COUT, KH, KW), jnp.float32, -bound, bound)
    bias = jax.random.uniform(kb, (COUT,), jnp.float32, -bound, bound)

    y = jax.block_until_ready(conv_transpose_silu_relu(x, weight, bias))
    y_ref = jax.block_until_ready(reference(x, weight, bias))

    assert y.shape == y_ref.shape, (y.shape, y_ref.shape)
    np.testing.assert_allclose(np.asarray(y), np.asarray(y_ref), atol=5e-4, rtol=5e-4)

    print("KERNEL_OK")
</pallas_src>

<mosaic_0001>
module attributes {stable_mosaic.version = 11 : i64} {
  func.func @kernel(%arg0: i32, %arg1: i32, %arg2: memref<1x304x128xf32, #tpu.memory_space<vmem>>, %arg3: memref<768x256xf32, #tpu.memory_space<vmem>>, %arg4: memref<384x256xf32, #tpu.memory_space<vmem>>, %arg5: memref<1x256xf32, #tpu.memory_space<vmem>>, %arg6: memref<1x256x512xf32, #tpu.memory_space<vmem>>) attributes {dimension_semantics = [#tpu.dimension_semantics<parallel>, #tpu.dimension_semantics<parallel>], iteration_bounds = array<i64: 2, 1>, scalar_prefetch = 0 : i64, scratch_operands = 0 : i64, tpu.core_type = #tpu.core_type<tc>, window_params = [{transform_indices = @transform_0, window_bounds = array<i64: 1, 304, 128>}, {pipeline_mode = #tpu.pipeline_mode<synchronous>, transform_indices = @transform_1, window_bounds = array<i64: 768, 256>}, {pipeline_mode = #tpu.pipeline_mode<synchronous>, transform_indices = @transform_2, window_bounds = array<i64: 384, 256>}, {pipeline_mode = #tpu.pipeline_mode<synchronous>, transform_indices = @transform_3, window_bounds = array<i64: 1, 256>}, {transform_indices = @transform_4, window_bounds = array<i64: 1, 256, 512>}]} {
    %c256_i32 = arith.constant 256 : i32
    %0 = arith.muli %arg1, %c256_i32 : i32
    %1 = tpu.assume_multiple %0, 8 : i32
    %c0 = arith.constant 0 : index
    %2 = arith.index_cast %1 : i32 to index
    %c0_0 = arith.constant 0 : index
    %3 = vector.load %arg2[%c0, %2, %c0_0] : memref<1x304x128xf32, #tpu.memory_space<vmem>>, vector<1x296x128xf32>
    %4 = vector.shape_cast %3 : vector<1x296x128xf32> to vector<296x128xf32>
    %5 = vector.extract_strided_slice %4 {offsets = [0, 0], sizes = [256, 128], strides = [1, 1]} : vector<296x128xf32> to vector<256x128xf32>
    %6 = vector.extract_strided_slice %4 {offsets = [16, 0], sizes = [256, 128], strides = [1, 1]} : vector<296x128xf32> to vector<256x128xf32>
    %7 = vector.extract_strided_slice %4 {offsets = [32, 0], sizes = [256, 128], strides = [1, 1]} : vector<296x128xf32> to vector<256x128xf32>
    %8 = vector.extract_strided_slice %4 {offsets = [1, 0], sizes = [256, 128], strides = [1, 1]} : vector<296x128xf32> to vector<256x128xf32>
    %9 = vector.extract_strided_slice %4 {offsets = [17, 0], sizes = [256, 128], strides = [1, 1]} : vector<296x128xf32> to vector<256x128xf32>
    %10 = vector.extract_strided_slice %4 {offsets = [33, 0], sizes = [256, 128], strides = [1, 1]} : vector<296x128xf32> to vector<256x128xf32>
    %11 = tpu.concatenate %5, %6, %7, %8, %9, %10 in 1 : vector<256x128xf32>, vector<256x128xf32>, vector<256x128xf32>, vector<256x128xf32>, vector<256x128xf32>, vector<256x128xf32> -> vector<256x768xf32>
    %c0_1 = arith.constant 0 : index
    %c0_2 = arith.constant 0 : index
    %12 = vector.load %arg3[%c0_1, %c0_2] : memref<768x256xf32, #tpu.memory_space<vmem>>, vector<768x256xf32>
    %cst = arith.constant dense<0.000000e+00> : vector<256x256xf32>
    %13 = tpu.matmul %11, %12, %cst {dimension_numbers = #tpu.dot_dimension_numbers<[1], [0], [0], [1], [0, 0, 1, 1], [], []>} : vector<256x768xf32>, vector<768x256xf32>, vector<256x256xf32> -> vector<256x256xf32>
    %14 = vector.extract_strided_slice %11 {offsets = [0, 384], sizes = [256, 384], strides = [1, 1]} : vector<256x768xf32> to vector<256x384xf32>
    %c0_3 = arith.constant 0 : index
    %c0_4 = arith.constant 0 : index
    %15 = vector.load %arg4[%c0_3, %c0_4] : memref<384x256xf32, #tpu.memory_space<vmem>>, vector<384x256xf32>
    %cst_5 = arith.constant dense<0.000000e+00> : vector<256x256xf32>
    %16 = tpu.matmul %14, %15, %cst_5 {dimension_numbers = #tpu.dot_dimension_numbers<[1], [0], [0], [1], [0, 0, 1, 1], [], []>} : vector<256x384xf32>, vector<384x256xf32>, vector<256x256xf32> -> vector<256x256xf32>
    %c0_6 = arith.constant 0 : index
    %c0_7 = arith.constant 0 : index
    %17 = vector.load %arg5[%c0_6, %c0_7] : memref<1x256xf32, #tpu.memory_space<vmem>>, vector<1x256xf32>
    %18 = vector.broadcast %17 : vector<1x256xf32> to vector<256x256xf32>
    %19 = arith.addf %13, %18 : vector<256x256xf32>
    %20 = vector.broadcast %17 : vector<1x256xf32> to vector<256x256xf32>
    %21 = arith.addf %16, %20 : vector<256x256xf32>
    %cst_8 = arith.constant 5.000000e-01 : f32
    %22 = vector.broadcast %cst_8 : f32 to vector<256x256xf32>
    %23 = arith.mulf %22, %19 : vector<256x256xf32>
    %cst_9 = arith.constant 5.000000e-01 : f32
    %24 = vector.broadcast %cst_9 : f32 to vector<256x256xf32>
    %25 = arith.mulf %24, %19 : vector<256x256xf32>
    %26 = math.tanh %25 : vector<256x256xf32>
    %cst_10 = arith.constant 1.000000e+00 : f32
    %27 = vector.broadcast %cst_10 : f32 to vector<256x256xf32>
    %28 = arith.addf %27, %26 : vector<256x256xf32>
    %29 = arith.mulf %23, %28 : vector<256x256xf32>
    %cst_11 = arith.constant 5.000000e-01 : f32
    %30 = vector.broadcast %cst_11 : f32 to vector<256x256xf32>
    %31 = arith.mulf %30, %21 : vector<256x256xf32>
    %cst_12 = arith.constant 5.000000e-01 : f32
    %32 = vector.broadcast %cst_12 : f32 to vector<256x256xf32>
    %33 = arith.mulf %32, %21 : vector<256x256xf32>
    %34 = math.tanh %33 : vector<256x256xf32>
    %cst_13 = arith.constant 1.000000e+00 : f32
    %35 = vector.broadcast %cst_13 : f32 to vector<256x256xf32>
    %36 = arith.addf %35, %34 : vector<256x256xf32>
    %37 = arith.mulf %31, %36 : vector<256x256xf32>
    %cst_14 = arith.constant 0.000000e+00 : f32
    %38 = vector.broadcast %cst_14 : f32 to vector<256x256xf32>
    %39 = arith.maximumf %29, %38 : vector<256x256xf32>
    %c0_15 = arith.constant 0 : index
    %c0_16 = arith.constant 0 : index
    %c0_17 = arith.constant 0 : index
    %40 = vector.load %arg6[%c0_15, %c0_16, %c0_17] : memref<1x256x512xf32, #tpu.memory_space<vmem>>, vector<1x256x256xf32>
    %41 = vector.shape_cast %40 : vector<1x256x256xf32> to vector<256x256xf32>
    %42 = vector.shape_cast %39 : vector<256x256xf32> to vector<1x256x256xf32>
    tpu.vector_store %arg6[%c0_15, %c0_16, %c0_17], %42 {strides = array<i32>} : memref<1x256x512xf32, #tpu.memory_space<vmem>>, vector<1x256x256xf32>,
    %cst_18 = arith.constant 0.000000e+00 : f32
    %43 = vector.broadcast %cst_18 : f32 to vector<256x256xf32>
    %44 = arith.maximumf %37, %43 : vector<256x256xf32>
    %c0_19 = arith.constant 0 : index
    %c0_20 = arith.constant 0 : index
    %c256 = arith.constant 256 : index
    %45 = vector.load %arg6[%c0_19, %c0_20, %c256] : memref<1x256x512xf32, #tpu.memory_space<vmem>>, vector<1x256x256xf32>
    %46 = vector.shape_cast %45 : vector<1x256x256xf32> to vector<256x256xf32>
    %47 = vector.shape_cast %44 : vector<256x256xf32> to vector<1x256x256xf32>
    tpu.vector_store %arg6[%c0_19, %c0_20, %c256], %47 {strides = array<i32>} : memref<1x256x512xf32, #tpu.memory_space<vmem>>, vector<1x256x256xf32>,
    return
  }
  func.func @transform_0(%arg0: i32, %arg1: i32) -> (i32, i32, i32) {
    %c0_i32 = arith.constant 0 : i32
    %c0_i32_0 = arith.constant 0 : i32
    %c0_i32_1 = arith.constant 0 : i32
    return %arg0, %c0_i32, %c0_i32_0 : i32, i32, i32
  }
  func.func @transform_1(%arg0: i32, %arg1: i32) -> (i32, i32) {
    %c0_i32 = arith.constant 0 : i32
    %c0_i32_0 = arith.constant 0 : i32
    %c0_i32_1 = arith.constant 0 : i32
    return %c0_i32, %c0_i32_0 : i32, i32
  }
  func.func @transform_2(%arg0: i32, %arg1: i32) -> (i32, i32) {
    %c0_i32 = arith.constant 0 : i32
    %c0_i32_0 = arith.constant 0 : i32
    %c0_i32_1 = arith.constant 0 : i32
    return %c0_i32, %c0_i32_0 : i32, i32
  }
  func.func @transform_3(%arg0: i32, %arg1: i32) -> (i32, i32) {
    %c0_i32 = arith.constant 0 : i32
    %c0_i32_0 = arith.constant 0 : i32
    %c0_i32_1 = arith.constant 0 : i32
    return %c0_i32, %c0_i32_0 : i32, i32
  }
  func.func @transform_4(%arg0: i32, %arg1: i32) -> (i32, i32, i32) {
    %c0_i32 = arith.constant 0 : i32
    %c0_i32_0 = arith.constant 0 : i32
    return %arg0, %arg1, %c0_i32 : i32, i32, i32
  }
}

</mosaic_0001>

<llo_original>
// kernel: conv_transpose_silu_relu.1
$region0: #{conv_transpose_silu_relu.1}
  #allocation0 [shape = 'u32[]', space=smem, size = 0x4, offset = 0x4, fixed_abs, tag = 'smem constant byte address 0x4 - core index']
  #allocation1 [shape = 'u32[144,128]{1,0:T(1,128)}', space=vmem, size = 0x12000, scoped, tag = 'internal scratch']
  %s0 = inlined_call_operand.vmem [shape: f32[2,304,128], index: 0, kind: input, shape index: {}]
  %s1 = inlined_call_operand.vmem [shape: f32[768,256], index: 1, kind: input, shape index: {}]
  %s2 = inlined_call_operand.vmem [shape: f32[384,256], index: 2, kind: input, shape index: {}]
  %s3 = inlined_call_operand.vmem [shape: f32[1,256], index: 3, kind: input, shape index: {}]
  %s4 = inlined_call_operand.vmem [shape: f32[2,256,512], index: 4, kind: output, shape index: {}]
  %s5 = sld [smem:[#allocation0]]
  $region49: #{conv_transpose_silu_relu.1} parent=0
    _
  %s7 = ssub.s32 1, %s5
  %s8 = scalar_select 0, %s7, %s5
  loop: start=0, step=1, limit=4
  $region2: #{conv_transpose_silu_relu.1} parent=0 // loop_pre_header
    _
  $region3: #{conv_transpose_silu_relu.1} parent=0 // loop_header
    %s10 = sphi 0, %s14
    %p11 = scmp.ge.s32.totalorder %s10, 4
    %s17 = sphi 0, %s29
    %s18 = sphi 0, %s25
    %s19 = sphi 0, %s17
    %s20 = sphi 0, %s18
    %s21 = sphi 0, %s19
    %s22 = sphi 0, %s20
    %s32 = sphi 0, %s34
    %s35 = sphi 0, %s32
    %s36 = sphi 0, %s35
    %s52 = sphi 0, %s36
    %s56 = sphi 0, %s56
    %s58 = sphi 0, %s56
    %s59 = sphi 0, %s58
    %s73 = sphi 0, %s59
    %s77 = sphi 0, %s77
    %s79 = sphi 0, %s77
    %s80 = sphi 0, %s79
    %s94 = sphi 0, %s80
    %s98 = sphi 0, %s98
    %s100 = sphi 0, %s98
    %s101 = sphi 0, %s100
    %s115 = sphi 0, %s101
    %s123 = sphi 0, %s125
    %s126 = sphi 0, %s123
    %s127 = sphi 0, %s126
    %s143 = sphi 0, %s127
  $region4: #{conv_transpose_silu_relu.1} parent=0 // loop_header_branch
    %13 = sbr.rel (%p11) target = $region8
  $region5: #{conv_transpose_silu_relu.1} parent=0 // loop_body
    %s15 = ssub.s32 %s10, 1
    %s16 = ssub.s32 %s10, 2
    %s23 = sadd.s32 1, %s18
    %p24 = scmp.ge.s32.totalorder %s23, 1
    %s25 = scalar_select %p24, 0, %s23
    %s26 = sadd.s32 1, %s17
    %s27 = scalar_select %p24, %s26, %s17
    %p28 = scmp.ge.s32.totalorder %s27, 2
    %s29 = scalar_select %p28, 0, %s27
    %s30 = ssub.s32 %s17, %s29
    %p31 = scmp.eq.s32.totalorder %s30, 0
    %s33 = sadd.s32 %s32, 1
    %s34 = scalar_select %p31, %s32, %s33
    %p37 = pneg %p31
    %p38 = scmp.eq.s32.totalorder %s10, 1
    %p39 = por %p37, %p38
    %p40 = scmp.ne.s32.totalorder %s32, %s35
    %p41 = scmp.eq.s32.totalorder %s10, 0
    %p42 = por %p40, %p41
    %p43 = scmp.ne.s32.totalorder %s32, %s35
    %p44 = scmp.eq.s32.totalorder %s15, 1
    %p45 = por %p43, %p44
    %p46 = scmp.ne.s32.totalorder %s35, %s36
    %p47 = scmp.eq.s32.totalorder %s15, 0
    %p48 = por %p46, %p47
    %p49 = scmp.ne.s32.totalorder %s35, %s36
    %p50 = scmp.eq.s32.totalorder %s16, 1
    %p51 = por %p49, %p50
    %p53 = scmp.ne.s32.totalorder %s36, %s52
    %p54 = scmp.eq.s32.totalorder %s16, 0
    %p55 = por %p53, %p54
    %s57 = sadd.s32 %s56, 1
    %p60 = scmp.eq.s32.totalorder %s10, 1
    %p61 = scmp.ne.s32.totalorder %s56, %s58
    %p62 = scmp.eq.s32.totalorder %s10, 0
    %p63 = por %p61, %p62
    %p64 = scmp.ne.s32.totalorder %s56, %s58
    %p65 = scmp.eq.s32.totalorder %s15, 1
    %p66 = por %p64, %p65
    %p67 = scmp.ne.s32.totalorder %s58, %s59
    %p68 = scmp.eq.s32.totalorder %s15, 0
    %p69 = por %p67, %p68
    %p70 = scmp.ne.s32.totalorder %s58, %s59
    %p71 = scmp.eq.s32.totalorder %s16, 1
    %p72 = por %p70, %p71
    %p74 = scmp.ne.s32.totalorder %s59, %s73
    %p75 = scmp.eq.s32.totalorder %s16, 0
    %p76 = por %p74, %p75
    %s78 = sadd.s32 %s77, 1
    %p81 = scmp.eq.s32.totalorder %s10, 1
    %p82 = scmp.ne.s32.totalorder %s77, %s79
    %p83 = scmp.eq.s32.totalorder %s10, 0
    %p84 = por %p82, %p83
    %p85 = scmp.ne.s32.totalorder %s77, %s79
    %p86 = scmp.eq.s32.totalorder %s15, 1
    %p87 = por %p85, %p86
    %p88 = scmp.ne.s32.totalorder %s79, %s80
    %p89 = scmp.eq.s32.totalorder %s15, 0
    %p90 = por %p88, %p89
    %p91 = scmp.ne.s32.totalorder %s79, %s80
    %p92 = scmp.eq.s32.totalorder %s16, 1
    %p93 = por %p91, %p92
    %p95 = scmp.ne.s32.totalorder %s80, %s94
    %p96 = scmp.eq.s32.totalorder %s16, 0
    %p97 = por %p95, %p96
    %s99 = sadd.s32 %s98, 1
    %p102 = scmp.eq.s32.totalorder %s10, 1
    %p103 = scmp.ne.s32.totalorder %s98, %s100
    %p104 = scmp.eq.s32.totalorder %s10, 0
    %p105 = por %p103, %p104
    %p106 = scmp.ne.s32.totalorder %s98, %s100
    %p107 = scmp.eq.s32.totalorder %s15, 1
    %p108 = por %p106, %p107
    %p109 = scmp.ne.s32.totalorder %s100, %s101
    %p110 = scmp.eq.s32.totalorder %s15, 0
    %p111 = por %p109, %p110
    %p112 = scmp.ne.s32.totalorder %s100, %s101
    %p113 = scmp.eq.s32.totalorder %s16, 1
    %p114 = por %p112, %p113
    %p116 = scmp.ne.s32.totalorder %s101, %s115
    %p117 = scmp.eq.s32.totalorder %s16, 0
    %p118 = por %p116, %p117
    %s119 = ssub.s32 %s17, %s29
    %s120 = ssub.s32 %s18, %s25
    %s121 = sor.u32 %s119, %s120
    %p122 = scmp.eq.s32.totalorder %s121, 0
    %s124 = sadd.s32 %s123, 1
    %s125 = scalar_select %p122, %s123, %s124
    %p128 = pneg %p122
    %p129 = scmp.eq.s32.totalorder %s10, 1
    %p130 = por %p128, %p129
    %p131 = scmp.ne.s32.totalorder %s123, %s126
    %p132 = scmp.eq.s32.totalorder %s10, 0
    %p133 = por %p131, %p132
    %p134 = scmp.ne.s32.totalorder %s123, %s126
    %p135 = scmp.eq.s32.totalorder %s15, 1
    %p136 = por %p134, %p135
    %p137 = scmp.ne.s32.totalorder %s126, %s127
    %p138 = scmp.eq.s32.totalorder %s15, 0
    %p139 = por %p137, %p138
    %p140 = scmp.ne.s32.totalorder %s126, %s127
    %p141 = scmp.eq.s32.totalorder %s16, 1
    %p142 = por %p140, %p141
    %p144 = scmp.ne.s32.totalorder %s127, %s143
    %p145 = scmp.eq.s32.totalorder %s16, 0
    %p146 = por %p144, %p145
    %p147 = scmp.le.s32.totalorder 1, %s10
    %p148 = scmp.lt.s32.totalorder %s10, 3
    %p149 = pnand %p147, %p148
    %p150 = pneg %p149
    // Predicated region
    $region9: #{conv_transpose_silu_relu.1} parent=5 // pred_check
      _
    $region10: #{conv_transpose_silu_relu.1} parent=5 // pred_check_branch
      %152 = sbr.rel (%p149) target = $region12
    $region11: #{conv_transpose_silu_relu.1} parent=5 // pred_region
      %s153 = ssub.s32 %s10, 1
      // Predicated region
      $region13: #{conv_transpose_silu_relu.1} parent=11 // pred_check
        %p154 = pneg %p69
      $region14: #{conv_transpose_silu_relu.1} parent=11 // pred_check_branch
        %156 = sbr.rel (%p154) target = $region16
      $region15: #{conv_transpose_silu_relu.1} parent=11 // pred_region
        _
      $region16: #{conv_transpose_silu_relu.1} parent=11 // pred_fallthru
        _
      // Predicated region
      $region17: #{conv_transpose_silu_relu.1} parent=11 // pred_check
        %p157 = pneg %p90
      $region18: #{conv_transpose_silu_relu.1} parent=11 // pred_check_branch
        %159 = sbr.rel (%p157) target = $region20
      $region19: #{conv_transpose_silu_relu.1} parent=11 // pred_region
        _
      $region20: #{conv_transpose_silu_relu.1} parent=11 // pred_fallthru
        _
      // Predicated region
      $region21: #{conv_transpose_silu_relu.1} parent=11 // pred_check
        %p160 = pneg %p111
      $region22: #{conv_transpose_silu_relu.1} parent=11 // pred_check_branch
        %162 = sbr.rel (%p160) target = $region24
      $region23: #{conv_transpose_silu_relu.1} parent=11 // pred_region
        _
      $region24: #{conv_transpose_silu_relu.1} parent=11 // pred_fallthru
        _
    $region12: #{conv_transpose_silu_relu.1} parent=5 // pred_fallthru
      _
    %p163 = scmp.lt.s32.totalorder %s10, 2
    // Predicated region
    $region25: #{conv_transpose_silu_relu.1} parent=5 // pred_check
      %p164 = pneg %p163
    $region26: #{conv_transpose_silu_relu.1} parent=5 // pred_check_branch
      %166 = sbr.rel (%p164) target = $region28
    $region27: #{conv_transpose_silu_relu.1} parent=5 // pred_region
      // Predicated region
      $region29: #{conv_transpose_silu_relu.1} parent=27 // pred_check
        %p167 = pneg %p42
      $region30: #{conv_transpose_silu_relu.1} parent=27 // pred_check_branch
        %169 = sbr.rel (%p167) target = $region32
      $region31: #{conv_transpose_silu_relu.1} parent=27 // pred_region
        %p170 = scmp.lt.s32.totalorder %s17, 1
        %s171 = scalar_select %p170, %s17, 1
        %s172 = smul.addr %s171, 38
        %s173 = smul.addr %s172, 8
        %s174 = scalar_lea.vmem %s0, %s173
      $region32: #{conv_transpose_silu_relu.1} parent=27 // pred_fallthru
        _
    $region28: #{conv_transpose_silu_relu.1} parent=5 // pred_fallthru
      _
    %p175 = scmp.le.s32.totalorder 1, %s10
    %p176 = scmp.lt.s32.totalorder %s10, 3
    %p177 = pnand %p175, %p176
    %p178 = pneg %p177
    // Predicated region
    $region33: #{conv_transpose_silu_relu.1} parent=5 // pred_check
      _
    $region34: #{conv_transpose_silu_relu.1} parent=5 // pred_check_branch
      %180 = sbr.rel (%p177) target = $region36
    $region35: #{conv_transpose_silu_relu.1} parent=5 // pred_region
      %s181 = ssub.s32 %s10, 1
      %p182 = scmp.lt.s32.totalorder %s19, 1
      %s183 = scalar_select %p182, %s19, 1
      %s184 = smul.addr %s183, 38
      %s185 = smul.addr %s184, 8
      %s186 = scalar_lea.vmem %s0, %s185
      %p187 = pneg %p48
      %p188 = pneg %p45
      %p189 = pneg %p69
      %p190 = pneg %p66
      %p191 = pneg %p90
      %p192 = pneg %p87
      %p193 = pneg %p111
      %p194 = pneg %p108
      %p195 = pneg %p139
      %p196 = pneg %p136
      %s197 = smul.u32 32, %s20
      %p198 = scmp.lt.s32.totalorder %s19, 1
      %s199 = scalar_select %p198, %s19, 1
      %p200 = scmp.lt.s32.totalorder %s197, 31
      %s201 = scalar_select %p200, %s197, 31
      %s202 = smul.addr %s201, 4
      %s203 = smul.addr %s199, 128
      %s204 = sadd.s32 %s202, %s203
      %s205 = smul.addr %s204, 8
      %s206 = scalar_lea.vmem %s4, %s205
      %p207 = scmp.lt.s32.totalorder %s19, 1
      %s208 = scalar_select %p207, %s19, 1
      %s209 = smul.addr %s208, 38
      %s210 = smul.addr %s209, 8
      %s211 = scalar_lea.vmem %s0, %s210
      %s212 = smul.u32 32, %s20
      %p213 = scmp.lt.s32.totalorder %s19, 1
      %s214 = scalar_select %p213, %s19, 1
      %p215 = scmp.lt.s32.totalorder %s212, 31
      %s216 = scalar_select %p215, %s212, 31
      %s217 = smul.addr %s216, 4
      %s218 = smul.addr %s214, 128
      %s219 = sadd.s32 %s217, %s218
      %s220 = smul.addr %s219, 8
      %s221 = scalar_lea.vmem %s4, %s220
      %s222 = smul.u32 32, %s20
      %s223 = smul.u32 %s20, 256
      %s224 = scalar_lea.vmem %s211, %s223
      %v225 = vld [vmem:[%s224] sm:$0xff]
      %v226 = vld [vmem:[%s224 + $0x8] sm:$0xff]
      %v227 = vld [vmem:[%s224 + $0x10] sm:$0xff]
      %v228 = vld [vmem:[%s224 + $0x18] sm:$0xff]
      %v229 = vld [vmem:[%s224 + $0x20] sm:$0xff]
      %v230 = vld [vmem:[%s224 + $0x28] sm:$0xff]
      %v231 = vld [vmem:[%s224 + $0x30] sm:$0xff]
      %v232 = vld [vmem:[%s224 + $0x38] sm:$0xff]
      %v233 = vld [vmem:[%s224 + $0x40] sm:$0xff]
      %v234 = vld [vmem:[%s224 + $0x48] sm:$0xff]
      %v235 = vld [vmem:[%s224 + $0x50] sm:$0xff]
      %v236 = vld [vmem:[%s224 + $0x58] sm:$0xff]
      %v237 = vld [vmem:[%s224 + $0x60] sm:$0xff]
      %v238 = vld [vmem:[%s224 + $0x68] sm:$0xff]
      %v239 = vld [vmem:[%s224 + $0x70] sm:$0xff]
      %v240 = vld [vmem:[%s224 + $0x78] sm:$0xff]
      %v241 = vld [vmem:[%s224 + $0x80] sm:$0xff]
      %v242 = vld [vmem:[%s224 + $0x88] sm:$0xff]
      %v243 = vld [vmem:[%s224 + $0x90] sm:$0xff]
      %v244 = vld [vmem:[%s224 + $0x98] sm:$0xff]
      %v245 = vld [vmem:[%s224 + $0xa0] sm:$0xff]
      %v246 = vld [vmem:[%s224 + $0xa8] sm:$0xff]
      %v247 = vld [vmem:[%s224 + $0xb0] sm:$0xff]
      %v248 = vld [vmem:[%s224 + $0xb8] sm:$0xff]
      %v249 = vld [vmem:[%s224 + $0xc0] sm:$0xff]
      %v250 = vld [vmem:[%s224 + $0xc8] sm:$0xff]
      %v251 = vld [vmem:[%s224 + $0xd0] sm:$0xff]
      %v252 = vld [vmem:[%s224 + $0xd8] sm:$0xff]
      %v253 = vld [vmem:[%s224 + $0xe0] sm:$0xff]
      %v254 = vld [vmem:[%s224 + $0xe8] sm:$0xff]
      %v255 = vld [vmem:[%s224 + $0xf0] sm:$0xff]
      %v256 = vld [vmem:[%s224 + $0xf8] sm:$0xff]
      %v257 = vld [vmem:[%s224 + $0x100] sm:$0xff]
      %v258 = vld [vmem:[%s224 + $0x108] sm:$0xff]
      %v259 = vld [vmem:[%s224 + $0x110] sm:$0xff]
      %v260 = vld [vmem:[%s224 + $0x118] sm:$0xff]
      %v261 = vld [vmem:[%s224 + $0x120] sm:$0xff]
      %vm295 = vcmask 1046528
      %v296 = vrot.slane %v225, 1
      %v297 = vrot.slane %v226, 1
      %v298 = vsel %vm295, %v296, %v297
      %v299 = vrot.slane %v227, 1
      %v300 = vsel %vm295, %v297, %v299
      %v301 = vrot.slane %v228, 1
      %v302 = vsel %vm295, %v299, %v301
      %v303 = vrot.slane %v229, 1
      %v304 = vsel %vm295, %v301, %v303
      %v305 = vrot.slane %v230, 1
      %v306 = vsel %vm295, %v303, %v305
      %v307 = vrot.slane %v231, 1
      %v308 = vsel %vm295, %v305, %v307
      %v309 = vrot.slane %v232, 1
      %v310 = vsel %vm295, %v307, %v309
      %v311 = vrot.slane %v233, 1
      %v312 = vsel %vm295, %v309, %v311
      %v313 = vrot.slane %v234, 1
      %v314 = vsel %vm295, %v311, %v313
      %v315 = vrot.slane %v235, 1
      %v316 = vsel %vm295, %v313, %v315
      %v317 = vrot.slane %v236, 1
      %v318 = vsel %vm295, %v315, %v317
      %v319 = vrot.slane %v237, 1
      %v320 = vsel %vm295, %v317, %v319
      %v321 = vrot.slane %v238, 1
      %v322 = vsel %vm295, %v319, %v321
      %v323 = vrot.slane %v239, 1
      %v324 = vsel %vm295, %v321, %v323
      %v325 = vrot.slane %v240, 1
      %v326 = vsel %vm295, %v323, %v325
      %v327 = vrot.slane %v241, 1
      %v328 = vsel %vm295, %v325, %v327
      %v329 = vrot.slane %v242, 1
      %v330 = vsel %vm295, %v327, %v329
      %v331 = vrot.slane %v243, 1
      %v332 = vsel %vm295, %v329, %v331
      %v333 = vrot.slane %v244, 1
      %v334 = vsel %vm295, %v331, %v333
      %v335 = vrot.slane %v245, 1
      %v336 = vsel %vm295, %v333, %v335
      %v337 = vrot.slane %v246, 1
      %v338 = vsel %vm295, %v335, %v337
      %v339 = vrot.slane %v247, 1
      %v340 = vsel %vm295, %v337, %v339
      %v341 = vrot.slane %v248, 1
      %v342 = vsel %vm295, %v339, %v341
      %v343 = vrot.slane %v249, 1
      %v344 = vsel %vm295, %v341, %v343
      %v345 = vrot.slane %v250, 1
      %v346 = vsel %vm295, %v343, %v345
      %v347 = vrot.slane %v251, 1
      %v348 = vsel %vm295, %v345, %v347
      %v349 = vrot.slane %v252, 1
      %v350 = vsel %vm295, %v347, %v349
      %v351 = vrot.slane %v253, 1
      %v352 = vsel %vm295, %v349, %v351
      %v353 = vrot.slane %v254, 1
      %v354 = vsel %vm295, %v351, %v353
      %v355 = vrot.slane %v255, 1
      %v356 = vsel %vm295, %v353, %v355
      %v357 = vrot.slane %v256, 1
      %v358 = vsel %vm295, %v355, %v357
      %v359 = vrot.slane %v257, 1
      %v360 = vsel %vm295, %v357, %v359
      %v395 = vrot.slane %v258, 1
      %v396 = vsel %vm295, %v359, %v395
      %v397 = vrot.slane %v259, 1
      %v398 = vsel %vm295, %v395, %v397
      %v403 = vrot.slane %v260, 1
      %v404 = vsel %vm295, %v397, %v403
      %v405 = vrot.slane %v261, 1
      %v406 = vsel %vm295, %v403, %v405
      %v409 = vld [vmem:[%s1] sm:$0xff]
      %v410 = vld [vmem:[%s1 + $0x8] sm:$0xff]
      %v411 = vld [vmem:[%s1 + $0x10] sm:$0xff]
      %v412 = vld [vmem:[%s1 + $0x18] sm:$0xff]
      %v413 = vld [vmem:[%s1 + $0x20] sm:$0xff]
      %v414 = vld [vmem:[%s1 + $0x28] sm:$0xff]
      %v415 = vld [vmem:[%s1 + $0x30] sm:$0xff]
      %v416 = vld [vmem:[%s1 + $0x38] sm:$0xff]
      %v417 = vld [vmem:[%s1 + $0x40] sm:$0xff]
      %v418 = vld [vmem:[%s1 + $0x48] sm:$0xff]
      %v419 = vld [vmem:[%s1 + $0x50] sm:$0xff]
      %v420 = vld [vmem:[%s1 + $0x58] sm:$0xff]
      %v421 = vld [vmem:[%s1 + $0x60] sm:$0xff]
      %v422 = vld [vmem:[%s1 + $0x68] sm:$0xff]
      %v423 = vld [vmem:[%s1 + $0x70] sm:$0xff]
      %v424 = vld [vmem:[%s1 + $0x78] sm:$0xff]
      %v425 = vld [vmem:[%s1 + $0x80] sm:$0xff]
      %v426 = vld [vmem:[%s1 + $0x88] sm:$0xff]
      %v427 = vld [vmem:[%s1 + $0x90] sm:$0xff]
      %v428 = vld [vmem:[%s1 + $0x98] sm:$0xff]
      %v429 = vld [vmem:[%s1 + $0xa0] sm:$0xff]
      %v430 = vld [vmem:[%s1 + $0xa8] sm:$0xff]
      %v431 = vld [vmem:[%s1 + $0xb0] sm:$0xff]
      %v432 = vld [vmem:[%s1 + $0xb8] sm:$0xff]
      %v433 = vld [vmem:[%s1 + $0xc0] sm:$0xff]
      %v434 = vld [vmem:[%s1 + $0xc8] sm:$0xff]
      %v435 = vld [vmem:[%s1 + $0xd0] sm:$0xff]
      %v436 = vld [vmem:[%s1 + $0xd8] sm:$0xff]
      %v437 = vld [vmem:[%s1 + $0xe0] sm:$0xff]
      %v438 = vld [vmem:[%s1 + $0xe8] sm:$0xff]
      %v439 = vld [vmem:[%s1 + $0xf0] sm:$0xff]
      %v440 = vld [vmem:[%s1 + $0xf8] sm:$0xff]
      %v441 = vld [vmem:[%s1 + $0x100] sm:$0xff]
      %v442 = vld [vmem:[%s1 + $0x108] sm:$0xff]
      %v443 = vld [vmem:[%s1 + $0x110] sm:$0xff]
      %v444 = vld [vmem:[%s1 + $0x118] sm:$0xff]
      %v445 = vld [vmem:[%s1 + $0x120] sm:$0xff]
      %v446 = vld [vmem:[%s1 + $0x128] sm:$0xff]
      %v447 = vld [vmem:[%s1 + $0x130] sm:$0xff]
      %v448 = vld [vmem:[%s1 + $0x138] sm:$0xff]
      %v449 = vld [vmem:[%s1 + $0x140] sm:$0xff]
      %v450 = vld [vmem:[%s1 + $0x148] sm:$0xff]
      %v451 = vld [vmem:[%s1 + $0x150] sm:$0xff]
      %v452 = vld [vmem:[%s1 + $0x158] sm:$0xff]
      %v453 = vld [vmem:[%s1 + $0x160] sm:$0xff]
      %v454 = vld [vmem:[%s1 + $0x168] sm:$0xff]
      %v455 = vld [vmem:[%s1 + $0x170] sm:$0xff]
      %v456 = vld [vmem:[%s1 + $0x178] sm:$0xff]
      %v457 = vld [vmem:[%s1 + $0x180] sm:$0xff]
      %v458 = vld [vmem:[%s1 + $0x188] sm:$0xff]
      %v459 = vld [vmem:[%s1 + $0x190] sm:$0xff]
      %v460 = vld [vmem:[%s1 + $0x198] sm:$0xff]
      %v461 = vld [vmem:[%s1 + $0x1a0] sm:$0xff]
      %v462 = vld [vmem:[%s1 + $0x1a8] sm:$0xff]
      %v463 = vld [vmem:[%s1 + $0x1b0] sm:$0xff]
      %v464 = vld [vmem:[%s1 + $0x1b8] sm:$0xff]
      %v465 = vld [vmem:[%s1 + $0x1c0] sm:$0xff]
      %v466 = vld [vmem:[%s1 + $0x1c8] sm:$0xff]
      %v467 = vld [vmem:[%s1 + $0x1d0] sm:$0xff]
      %v468 = vld [vmem:[%s1 + $0x1d8] sm:$0xff]
      %v469 = vld [vmem:[%s1 + $0x1e0] sm:$0xff]
      %v470 = vld [vmem:[%s1 + $0x1e8] sm:$0xff]
      %v471 = vld [vmem:[%s1 + $0x1f0] sm:$0xff]
      %v472 = vld [vmem:[%s1 + $0x1f8] sm:$0xff]
      %v473 = vld [vmem:[%s1 + $0x200] sm:$0xff]
      %v474 = vld [vmem:[%s1 + $0x208] sm:$0xff]
      %v475 = vld [vmem:[%s1 + $0x210] sm:$0xff]
      %v476 = vld [vmem:[%s1 + $0x218] sm:$0xff]
      %v477 = vld [vmem:[%s1 + $0x220] sm:$0xff]
      %v478 = vld [vmem:[%s1 + $0x228] sm:$0xff]
      %v479 = vld [vmem:[%s1 + $0x230] sm:$0xff]
      %v480 = vld [vmem:[%s1 + $0x238] sm:$0xff]
      %v481 = vld [vmem:[%s1 + $0x240] sm:$0xff]
      %v482 = vld [vmem:[%s1 + $0x248] sm:$0xff]
      %v483 = vld [vmem:[%s1 + $0x250] sm:$0xff]
      %v484 = vld [vmem:[%s1 + $0x258] sm:$0xff]
      %v485 = vld [vmem:[%s1 + $0x260] sm:$0xff]
      %v486 = vld [vmem:[%s1 + $0x268] sm:$0xff]
      %v487 = vld [vmem:[%s1 + $0x270] sm:$0xff]
      %v488 = vld [vmem:[%s1 + $0x278] sm:$0xff]
      %v489 = vld [vmem:[%s1 + $0x280] sm:$0xff]
      %v490 = vld [vmem:[%s1 + $0x288] sm:$0xff]
      %v491 = vld [vmem:[%s1 + $0x290] sm:$0xff]
      %v492 = vld [vmem:[%s1 + $0x298] sm:$0xff]
      %v493 = vld [vmem:[%s1 + $0x2a0] sm:$0xff]
      %v494 = vld [vmem:[%s1 + $0x2a8] sm:$0xff]
      %v495 = vld [vmem:[%s1 + $0x2b0] sm:$0xff]
      %v496 = vld [vmem:[%s1 + $0x2b8] sm:$0xff]
      %v497 = vld [vmem:[%s1 + $0x2c0] sm:$0xff]
      %v498 = vld [vmem:[%s1 + $0x2c8] sm:$0xff]
      %v499 = vld [vmem:[%s1 + $0x2d0] sm:$0xff]
      %v500 = vld [vmem:[%s1 + $0x2d8] sm:$0xff]
      %v501 = vld [vmem:[%s1 + $0x2e0] sm:$0xff]
      %v502 = vld [vmem:[%s1 + $0x2e8] sm:$0xff]
      %v503 = vld [vmem:[%s1 + $0x2f0] sm:$0xff]
      %v504 = vld [vmem:[%s1 + $0x2f8] sm:$0xff]
      %v505 = vld [vmem:[%s1 + $0x300] sm:$0xff]
      %v506 = vld [vmem:[%s1 + $0x308] sm:$0xff]
      %v507 = vld [vmem:[%s1 + $0x310] sm:$0xff]
      %v508 = vld [vmem:[%s1 + $0x318] sm:$0xff]
      %v509 = vld [vmem:[%s1 + $0x320] sm:$0xff]
      %v510 = vld [vmem:[%s1 + $0x328] sm:$0xff]
      %v511 = vld [vmem:[%s1 + $0x330] sm:$0xff]
      %v512 = vld [vmem:[%s1 + $0x338] sm:$0xff]
      %v513 = vld [vmem:[%s1 + $0x340] sm:$0xff]
      %v514 = vld [vmem:[%s1 + $0x348] sm:$0xff]
      %v515 = vld [vmem:[%s1 + $0x350] sm:$0xff]
      %v516 = vld [vmem:[%s1 + $0x358] sm:$0xff]
      %v517 = vld [vmem:[%s1 + $0x360] sm:$0xff]
      %v518 = vld [vmem:[%s1 + $0x368] sm:$0xff]
      %v519 = vld [vmem:[%s1 + $0x370] sm:$0xff]
      %v520 = vld [vmem:[%s1 + $0x378] sm:$0xff]
      %v521 = vld [vmem:[%s1 + $0x380] sm:$0xff]
      %v522 = vld [vmem:[%s1 + $0x388] sm:$0xff]
      %v523 = vld [vmem:[%s1 + $0x390] sm:$0xff]
      %v524 = vld [vmem:[%s1 + $0x398] sm:$0xff]
      %v525 = vld [vmem:[%s1 + $0x3a0] sm:$0xff]
      %v526 = vld [vmem:[%s1 + $0x3a8] sm:$0xff]
      %v527 = vld [vmem:[%s1 + $0x3b0] sm:$0xff]
      %v528 = vld [vmem:[%s1 + $0x3b8] sm:$0xff]
      %v529 = vld [vmem:[%s1 + $0x3c0] sm:$0xff]
      %v530 = vld [vmem:[%s1 + $0x3c8] sm:$0xff]
      %v531 = vld [vmem:[%s1 + $0x3d0] sm:$0xff]
      %v532 = vld [vmem:[%s1 + $0x3d8] sm:$0xff]
      %v533 = vld [vmem:[%s1 + $0x3e0] sm:$0xff]
      %v534 = vld [vmem:[%s1 + $0x3e8] sm:$0xff]
      %v535 = vld [vmem:[%s1 + $0x3f0] sm:$0xff]
      %v536 = vld [vmem:[%s1 + $0x3f8] sm:$0xff]
      %v537 = vld [vmem:[%s1 + $0x400] sm:$0xff]
      %v538 = vld [vmem:[%s1 + $0x408] sm:$0xff]
      %v539 = vld [vmem:[%s1 + $0x410] sm:$0xff]
      %v540 = vld [vmem:[%s1 + $0x418] sm:$0xff]
      %v541 = vld [vmem:[%s1 + $0x420] sm:$0xff]
      %v542 = vld [vmem:[%s1 + $0x428] sm:$0xff]
      %v543 = vld [vmem:[%s1 + $0x430] sm:$0xff]
      %v544 = vld [vmem:[%s1 + $0x438] sm:$0xff]
      %v545 = vld [vmem:[%s1 + $0x440] sm:$0xff]
      %v546 = vld [vmem:[%s1 + $0x448] sm:$0xff]
      %v547 = vld [vmem:[%s1 + $0x450] sm:$0xff]
      %v548 = vld [vmem:[%s1 + $0x458] sm:$0xff]
      %v549 = vld [vmem:[%s1 + $0x460] sm:$0xff]
      %v550 = vld [vmem:[%s1 + $0x468] sm:$0xff]
      %v551 = vld [vmem:[%s1 + $0x470] sm:$0xff]
      %v552 = vld [vmem:[%s1 + $0x478] sm:$0xff]
      %v553 = vld [vmem:[%s1 + $0x480] sm:$0xff]
      %v554 = vld [vmem:[%s1 + $0x488] sm:$0xff]
      %v555 = vld [vmem:[%s1 + $0x490] sm:$0xff]
      %v556 = vld [vmem:[%s1 + $0x498] sm:$0xff]
      %v557 = vld [vmem:[%s1 + $0x4a0] sm:$0xff]
      %v558 = vld [vmem:[%s1 + $0x4a8] sm:$0xff]
      %v559 = vld [vmem:[%s1 + $0x4b0] sm:$0xff]
      %v560 = vld [vmem:[%s1 + $0x4b8] sm:$0xff]
      %v561 = vld [vmem:[%s1 + $0x4c0] sm:$0xff]
      %v562 = vld [vmem:[%s1 + $0x4c8] sm:$0xff]
      %v563 = vld [vmem:[%s1 + $0x4d0] sm:$0xff]
      %v564 = vld [vmem:[%s1 + $0x4d8] sm:$0xff]
      %v565 = vld [vmem:[%s1 + $0x4e0] sm:$0xff]
      %v566 = vld [vmem:[%s1 + $0x4e8] sm:$0xff]
      %v567 = vld [vmem:[%s1 + $0x4f0] sm:$0xff]
      %v568 = vld [vmem:[%s1 + $0x4f8] sm:$0xff]
      %v569 = vld [vmem:[%s1 + $0x500] sm:$0xff]
      %v570 = vld [vmem:[%s1 + $0x508] sm:$0xff]
      %v571 = vld [vmem:[%s1 + $0x510] sm:$0xff]
      %v572 = vld [vmem:[%s1 + $0x518] sm:$0xff]
      %v573 = vld [vmem:[%s1 + $0x520] sm:$0xff]
      %v574 = vld [vmem:[%s1 + $0x528] sm:$0xff]
      %v575 = vld [vmem:[%s1 + $0x530] sm:$0xff]
      %v576 = vld [vmem:[%s1 + $0x538] sm:$0xff]
      %v577 = vld [vmem:[%s1 + $0x540] sm:$0xff]
      %v578 = vld [vmem:[%s1 + $0x548] sm:$0xff]
      %v579 = vld [vmem:[%s1 + $0x550] sm:$0xff]
      %v580 = vld [vmem:[%s1 + $0x558] sm:$0xff]
      %v581 = vld [vmem:[%s1 + $0x560] sm:$0xff]
      %v582 = vld [vmem:[%s1 + $0x568] sm:$0xff]
      %v583 = vld [vmem:[%s1 + $0x570] sm:$0xff]
      %v584 = vld [vmem:[%s1 + $0x578] sm:$0xff]
      %v585 = vld [vmem:[%s1 + $0x580] sm:$0xff]
      %v586 = vld [vmem:[%s1 + $0x588] sm:$0xff]
      %v587 = vld [vmem:[%s1 + $0x590] sm:$0xff]
      %v588 = vld [vmem:[%s1 + $0x598] sm:$0xff]
      %v589 = vld [vmem:[%s1 + $0x5a0] sm:$0xff]
      %v590 = vld [vmem:[%s1 + $0x5a8] sm:$0xff]
      %v591 = vld [vmem:[%s1 + $0x5b0] sm:$0xff]
      %v592 = vld [vmem:[%s1 + $0x5b8] sm:$0xff]
      %v593 = vld [vmem:[%s1 + $0x5c0] sm:$0xff]
      %v594 = vld [vmem:[%s1 + $0x5c8] sm:$0xff]
      %v595 = vld [vmem:[%s1 + $0x5d0] sm:$0xff]
      %v596 = vld [vmem:[%s1 + $0x5d8] sm:$0xff]
      %v597 = vld [vmem:[%s1 + $0x5e0] sm:$0xff]
      %v598 = vld [vmem:[%s1 + $0x5e8] sm:$0xff]
      %v599 = vld [vmem:[%s1 + $0x5f0] sm:$0xff]
      %v600 = vld [vmem:[%s1 + $0x5f8] sm:$0xff]
      %v601 = vld [vmem:[%s2] sm:$0xff]
      %v602 = vld [vmem:[%s2 + $0x8] sm:$0xff]
      %v603 = vld [vmem:[%s2 + $0x10] sm:$0xff]
      %v604 = vld [vmem:[%s2 + $0x18] sm:$0xff]
      %v605 = vld [vmem:[%s2 + $0x20] sm:$0xff]
      %v606 = vld [vmem:[%s2 + $0x28] sm:$0xff]
      %v607 = vld [vmem:[%s2 + $0x30] sm:$0xff]
      %v608 = vld [vmem:[%s2 + $0x38] sm:$0xff]
      %v609 = vld [vmem:[%s2 + $0x40] sm:$0xff]
      %v610 = vld [vmem:[%s2 + $0x48] sm:$0xff]
      %v611 = vld [vmem:[%s2 + $0x50] sm:$0xff]
      %v612 = vld [vmem:[%s2 + $0x58] sm:$0xff]
      %v613 = vld [vmem:[%s2 + $0x60] sm:$0xff]
      %v614 = vld [vmem:[%s2 + $0x68] sm:$0xff]
      %v615 = vld [vmem:[%s2 + $0x70] sm:$0xff]
      %v616 = vld [vmem:[%s2 + $0x78] sm:$0xff]
      %v617 = vld [vmem:[%s2 + $0x80] sm:$0xff]
      %v618 = vld [vmem:[%s2 + $0x88] sm:$0xff]
      %v619 = vld [vmem:[%s2 + $0x90] sm:$0xff]
      %v620 = vld [vmem:[%s2 + $0x98] sm:$0xff]
      %v621 = vld [vmem:[%s2 + $0xa0] sm:$0xff]
      %v622 = vld [vmem:[%s2 + $0xa8] sm:$0xff]
      %v623 = vld [vmem:[%s2 + $0xb0] sm:$0xff]
      %v624 = vld [vmem:[%s2 + $0xb8] sm:$0xff]
      %v625 = vld [vmem:[%s2 + $0xc0] sm:$0xff]
      %v626 = vld [vmem:[%s2 + $0xc8] sm:$0xff]
      %v627 = vld [vmem:[%s2 + $0xd0] sm:$0xff]
      %v628 = vld [vmem:[%s2 + $0xd8] sm:$0xff]
      %v629 = vld [vmem:[%s2 + $0xe0] sm:$0xff]
      %v630 = vld [vmem:[%s2 + $0xe8] sm:$0xff]
      %v631 = vld [vmem:[%s2 + $0xf0] sm:$0xff]
      %v632 = vld [vmem:[%s2 + $0xf8] sm:$0xff]
      %v633 = vld [vmem:[%s2 + $0x100] sm:$0xff]
      %v634 = vld [vmem:[%s2 + $0x108] sm:$0xff]
      %v635 = vld [vmem:[%s2 + $0x110] sm:$0xff]
      %v636 = vld [vmem:[%s2 + $0x118] sm:$0xff]
      %v637 = vld [vmem:[%s2 + $0x120] sm:$0xff]
      %v638 = vld [vmem:[%s2 + $0x128] sm:$0xff]
      %v639 = vld [vmem:[%s2 + $0x130] sm:$0xff]
      %v640 = vld [vmem:[%s2 + $0x138] sm:$0xff]
      %v641 = vld [vmem:[%s2 + $0x140] sm:$0xff]
      %v642 = vld [vmem:[%s2 + $0x148] sm:$0xff]
      %v643 = vld [vmem:[%s2 + $0x150] sm:$0xff]
      %v644 = vld [vmem:[%s2 + $0x158] sm:$0xff]
      %v645 = vld [vmem:[%s2 + $0x160] sm:$0xff]
      %v646 = vld [vmem:[%s2 + $0x168] sm:$0xff]
      %v647 = vld [vmem:[%s2 + $0x170] sm:$0xff]
      %v648 = vld [vmem:[%s2 + $0x178] sm:$0xff]
      %v649 = vld [vmem:[%s2 + $0x180] sm:$0xff]
      %v650 = vld [vmem:[%s2 + $0x188] sm:$0xff]
      %v651 = vld [vmem:[%s2 + $0x190] sm:$0xff]
      %v652 = vld [vmem:[%s2 + $0x198] sm:$0xff]
      %v653 = vld [vmem:[%s2 + $0x1a0] sm:$0xff]
      %v654 = vld [vmem:[%s2 + $0x1a8] sm:$0xff]
      %v655 = vld [vmem:[%s2 + $0x1b0] sm:$0xff]
      %v656 = vld [vmem:[%s2 + $0x1b8] sm:$0xff]
      %v657 = vld [vmem:[%s2 + $0x1c0] sm:$0xff]
      %v658 = vld [vmem:[%s2 + $0x1c8] sm:$0xff]
      %v659 = vld [vmem:[%s2 + $0x1d0] sm:$0xff]
      %v660 = vld [vmem:[%s2 + $0x1d8] sm:$0xff]
      %v661 = vld [vmem:[%s2 + $0x1e0] sm:$0xff]
      %v662 = vld [vmem:[%s2 + $0x1e8] sm:$0xff]
      %v663 = vld [vmem:[%s2 + $0x1f0] sm:$0xff]
      %v664 = vld [vmem:[%s2 + $0x1f8] sm:$0xff]
      %v665 = vld [vmem:[%s2 + $0x200] sm:$0xff]
      %v666 = vld [vmem:[%s2 + $0x208] sm:$0xff]
      %v667 = vld [vmem:[%s2 + $0x210] sm:$0xff]
      %v668 = vld [vmem:[%s2 + $0x218] sm:$0xff]
      %v669 = vld [vmem:[%s2 + $0x220] sm:$0xff]
      %v670 = vld [vmem:[%s2 + $0x228] sm:$0xff]
      %v671 = vld [vmem:[%s2 + $0x230] sm:$0xff]
      %v672 = vld [vmem:[%s2 + $0x238] sm:$0xff]
      %v673 = vld [vmem:[%s2 + $0x240] sm:$0xff]
      %v674 = vld [vmem:[%s2 + $0x248] sm:$0xff]
      %v675 = vld [vmem:[%s2 + $0x250] sm:$0xff]
      %v676 = vld [vmem:[%s2 + $0x258] sm:$0xff]
      %v677 = vld [vmem:[%s2 + $0x260] sm:$0xff]
      %v678 = vld [vmem:[%s2 + $0x268] sm:$0xff]
      %v679 = vld [vmem:[%s2 + $0x270] sm:$0xff]
      %v680 = vld [vmem:[%s2 + $0x278] sm:$0xff]
      %v681 = vld [vmem:[%s2 + $0x280] sm:$0xff]
      %v682 = vld [vmem:[%s2 + $0x288] sm:$0xff]
      %v683 = vld [vmem:[%s2 + $0x290] sm:$0xff]
      %v684 = vld [vmem:[%s2 + $0x298] sm:$0xff]
      %v685 = vld [vmem:[%s2 + $0x2a0] sm:$0xff]
      %v686 = vld [vmem:[%s2 + $0x2a8] sm:$0xff]
      %v687 = vld [vmem:[%s2 + $0x2b0] sm:$0xff]
      %v688 = vld [vmem:[%s2 + $0x2b8] sm:$0xff]
      %v689 = vld [vmem:[%s2 + $0x2c0] sm:$0xff]
      %v690 = vld [vmem:[%s2 + $0x2c8] sm:$0xff]
      %v691 = vld [vmem:[%s2 + $0x2d0] sm:$0xff]
      %v692 = vld [vmem:[%s2 + $0x2d8] sm:$0xff]
      %v693 = vld [vmem:[%s2 + $0x2e0] sm:$0xff]
      %v694 = vld [vmem:[%s2 + $0x2e8] sm:$0xff]
      %v695 = vld [vmem:[%s2 + $0x2f0] sm:$0xff]
      %v696 = vld [vmem:[%s2 + $0x2f8] sm:$0xff]
      %v697 = vld [vmem:[%s3] sm:$0x3]
      %v699 = vlaneseq
      %v700 = vshrl.u32 %v699, 7
      %v701 = vsub.s32 0, %v700
      %v702 = vrot.slane %v697, %v701
      %v703 = vlaneseq
      %v704 = vshrl.u32 %v703, 7
      %v705 = vsub.s32 1, %v704
      %v706 = vrot.slane %v697, %v705
      %709 = vmatprep.subr.mxu0 %v410
      %710 = vmatpush1.msra.mxu0 %v409
      %711 = vmatprep.subr.mxu0 %v412
      %712 = vmatpush1.msra.mxu0 %v411
      %713 = vmatprep.subr.mxu0 %v414
      %714 = vmatpush1.msra.mxu0 %v413
      %715 = vmatprep.subr.mxu0 %v416
      %716 = vmatpush1.msra.mxu0 %v415
      %717 = vmatprep.subr.mxu0 %v418
      %718 = vmatpush1.msra.mxu0 %v417
      %719 = vmatprep.subr.mxu0 %v420
      %720 = vmatpush1.msra.mxu0 %v419
      %721 = vmatprep.subr.mxu0 %v422
      %722 = vmatpush1.msra.mxu0 %v421
      %723 = vmatprep.subr.mxu0 %v424
      %724 = vmatpush1.msra.mxu0 %v423
      %725 = vmatprep.subr.mxu0 %v426
      %726 = vmatpush1.msra.mxu0 %v425
      %727 = vmatprep.subr.mxu0 %v428
      %728 = vmatpush1.msra.mxu0 %v427
      %729 = vmatprep.subr.mxu0 %v430
      %730 = vmatpush1.msra.mxu0 %v429
      %731 = vmatprep.subr.mxu0 %v432
      %732 = vmatpush1.msra.mxu0 %v431
      %733 = vmatprep.subr.mxu0 %v434
      %734 = vmatpush1.msra.mxu0 %v433
      %735 = vmatprep.subr.mxu0 %v436
      %736 = vmatpush1.msra.mxu0 %v435
      %737 = vmatprep.subr.mxu0 %v438
      %738 = vmatpush1.msra.mxu0 %v437
      %739 = vmatprep.subr.mxu0 %v440
      %740 = vmatpush1.msra.mxu0 %v439
      %741 = vmatprep.subr.mxu0 %v442
      %742 = vmatpush1.msra.mxu0 %v441
      %743 = vmatprep.subr.mxu0 %v444
      %744 = vmatpush1.msra.mxu0 %v443
      %745 = vmatprep.subr.mxu0 %v446
      %746 = vmatpush1.msra.mxu0 %v445
      %747 = vmatprep.subr.mxu0 %v448
      %748 = vmatpush1.msra.mxu0 %v447
      %749 = vmatprep.subr.mxu0 %v450
      %750 = vmatpush1.msra.mxu0 %v449
      %751 = vmatprep.subr.mxu0 %v452
      %752 = vmatpush1.msra.mxu0 %v451
      %753 = vmatprep.subr.mxu0 %v454
      %754 = vmatpush1.msra.mxu0 %v453
      %755 = vmatprep.subr.mxu0 %v456
      %756 = vmatpush1.msra.mxu0 %v455
      %757 = vmatprep.subr.mxu0 %v458
      %758 = vmatpush1.msra.mxu0 %v457
      %759 = vmatprep.subr.mxu0 %v460
      %760 = vmatpush1.msra.mxu0 %v459
      %761 = vmatprep.subr.mxu0 %v462
      %762 = vmatpush1.msra.mxu0 %v461
      %763 = vmatprep.subr.mxu0 %v464
      %764 = vmatpush1.msra.mxu0 %v463
      %765 = vmatprep.subr.mxu0 %v466
      %766 = vmatpush1.msra.mxu0 %v465
      %767 = vmatprep.subr.mxu0 %v468
      %768 = vmatpush1.msra.mxu0 %v467
      %769 = vmatprep.subr.mxu0 %v470
      %770 = vmatpush1.msra.mxu0 %v469
      %771 = vmatprep.subr.mxu0 %v472
      %772 = vmatpush1.msra.mxu0 %v471
      %773 = vmatprep.mubr.f32.mxu0 %v227
      %774 = vmatmul.mubr.f32.gmra.mrb[0].mxu0 %v225
      %v775 = vpop.f32.mrb[0].mxu0
      %v776 = vadd.f32 %v702, %v775
      %v777 = vpop.f32.mrb[0].mxu0
      %v778 = vadd.f32 %v706, %v777
      %779 = vmatprep.mubr.f32.mxu0 %v228
      %780 = vmatmul.mubr.f32.gmra.mrb[0].mxu0 %v226
      %v781 = vpop.f32.mrb[0].mxu0
      %v782 = vadd.f32 %v702, %v781
      %v783 = vpop.f32.mrb[0].mxu0
      %v784 = vadd.f32 %v706, %v783
      %785 = vmatprep.mubr.f32.mxu0 %v229
      %786 = vmatmul.mubr.f32.gmra.mrb[0].mxu0 %v227
      %v787 = vpop.f32.mrb[0].mxu0
      %v788 = vadd.f32 %v702, %v787
      %v789 = vpop.f32.mrb[0].mxu0
      %v790 = vadd.f32 %v706, %v789
      %791 = vmatprep.mubr.f32.mxu0 %v230
      %792 = vmatmul.mubr.f32.gmra.mrb[0].mxu0 %v228
      %v793 = vpop.f32.mrb[0].mxu0
      %v794 = vadd.f32 %v702, %v793
      %v795 = vpop.f32.mrb[0].mxu0
      %v796 = vadd.f32 %v706, %v795
      %797 = vmatprep.mubr.f32.mxu0 %v231
      %798 = vmatmul.mubr.f32.gmra.mrb[0].mxu0 %v229
      %v799 = vpop.f32.mrb[0].mxu0
      %v800 = vadd.f32 %v702, %v799
      %v801 = vpop.f32.mrb[0].mxu0
      %v802 = vadd.f32 %v706, %v801
      %803 = vmatprep.mubr.f32.mxu0 %v232
      %804 = vmatmul.mubr.f32.gmra.mrb[0].mxu0 %v230
      %v805 = vpop.f32.mrb[0].mxu0
      %v806 = vadd.f32 %v702, %v805
      %v807 = vpop.f32.mrb[0].mxu0
      %v808 = vadd.f32 %v706, %v807
      %809 = vmatprep.mubr.f32.mxu0 %v233
      %810 = vmatmul.mubr.f32.gmra.mrb[0].mxu0 %v231
      %v811 = vpop.f32.mrb[0].mxu0
      %v812 = vadd.f32 %v702, %v811
      %v813 = vpop.f32.mrb[0].mxu0
      %v814 = vadd.f32 %v706, %v813
      %815 = vmatprep.mubr.f32.mxu0 %v234
      %816 = vmatmul.mubr.f32.gmra.mrb[0].mxu0 %v232
      %v817 = vpop.f32.mrb[0].mxu0
      %v818 = vadd.f32 %v702, %v817
      %v819 = vpop.f32.mrb[0].mxu0
      %v820 = vadd.f32 %v706, %v819
      %821 = vmatprep.mubr.f32.mxu0 %v235
      %822 = vmatmul.mubr.f32.gmra.mrb[0].mxu0 %v233
      %v823 = vpop.f32.mrb[0].mxu0
      %v824 = vadd.f32 %v702, %v823
      %v825 = vpop.f32.mrb[0].mxu0
      %v826 = vadd.f32 %v706, %v825
      %827 = vmatprep.mubr.f32.mxu0 %v236
      %828 = vmatmul.mubr.f32.gmra.mrb[0].mxu0 %v234
      %v829 = vpop.f32.mrb[0].mxu0
      %v830 = vadd.f32 %v702, %v829
      %v831 = vpop.f32.mrb[0].mxu0
      %v832 = vadd.f32 %v706, %v831
      %833 = vmatprep.mubr.f32.mxu0 %v237
      %834 = vmatmul.mubr.f32.gmra.mrb[0].mxu0 %v235
      %v835 = vpop.f32.mrb[0].mxu0
      %v836 = vadd.f32 %v702, %v835
      %v837 = vpop.f32.mrb[0].mxu0
      %v838 = vadd.f32 %v706, %v837
      %839 = vmatprep.mubr.f32.mxu0 %v238
      %840 = vmatmul.mubr.f32.gmra.mrb[0].mxu0 %v236
      %v841 = vpop.f32.mrb[0].mxu0
      %v842 = vadd.f32 %v702, %v841
      %v843 = vpop.f32.mrb[0].mxu0
      %v844 = vadd.f32 %v706, %v843
      %845 = vmatprep.mubr.f32.mxu0 %v239
      %846 = vmatmul.mubr.f32.gmra.mrb[0].mxu0 %v237
      %v847 = vpop.f32.mrb[0].mxu0
      %v848 = vadd.f32 %v702, %v847
      %v849 = vpop.f32.mrb[0].mxu0
      %v850 = vadd.f32 %v706, %v849
      %851 = vmatprep.mubr.f32.mxu0 %v240
      %852 = vmatmul.mubr.f32.gmra.mrb[0].mxu0 %v238
      %v853 = vpop.f32.mrb[0].mxu0
      %v854 = vadd.f32 %v702, %v853
      %v855 = vpop.f32.mrb[0].mxu0
      %v856 = vadd.f32 %v706, %v855
      %857 = vmatprep.mubr.f32.mxu0 %v241
      %858 = vmatmul.mubr.f32.gmra.mrb[0].mxu0 %v239
      %v859 = vpop.f32.mrb[0].mxu0
      %v860 = vadd.f32 %v702, %v859
      %v861 = vpop.f32.mrb[0].mxu0
      %v862 = vadd.f32 %v706, %v861
      %863 = vmatprep.mubr.f32.mxu0 %v242
      %864 = vmatmul.mubr.f32.gmra.mrb[0].mxu0 %v240
      %v865 = vpop.f32.mrb[0].mxu0
      %v866 = vadd.f32 %v702, %v865
      %v867 = vpop.f32.mrb[0].mxu0
      %v868 = vadd.f32 %v706, %v867
      %869 = vmatprep.mubr.f32.mxu0 %v243
      %870 = vmatmul.mubr.f32.gmra.mrb[0].mxu0 %v241
      %v871 = vpop.f32.mrb[0].mxu0
      %v872 = vadd.f32 %v702, %v871
      %v873 = vpop.f32.mrb[0].mxu0
      %v874 = vadd.f32 %v706, %v873
      %875 = vmatprep.mubr.f32.mxu0 %v244
      %876 = vmatmul.mubr.f32.gmra.mrb[0].mxu0 %v242
      %v877 = vpop.f32.mrb[0].mxu0
      %v878 = vadd.f32 %v702, %v877
      %v879 = vpop.f32.mrb[0].mxu0
      %v880 = vadd.f32 %v706, %v879
      %881 = vmatprep.mubr.f32.mxu0 %v245
      %882 = vmatmul.mubr.f32.gmra.mrb[0].mxu0 %v243
      %v883 = vpop.f32.mrb[0].mxu0
      %v884 = vadd.f32 %v702, %v883
      %v885 = vpop.f32.mrb[0].mxu0
      %v886 = vadd.f32 %v706, %v885
      %887 = vmatprep.mubr.f32.mxu0 %v246
      %888 = vmatmul.mubr.f32.gmra.mrb[0].mxu0 %v244
      %v889 = vpop.f32.mrb[0].mxu0
      %v890 = vadd.f32 %v702, %v889
      %v891 = vpop.f32.mrb[0].mxu0
      %v892 = vadd.f32 %v706, %v891
      %893 = vmatprep.mubr.f32.mxu0 %v247
      %894 = vmatmul.mubr.f32.gmra.mrb[0].mxu0 %v245
      %v895 = vpop.f32.mrb[0].mxu0
      %v896 = vadd.f32 %v702, %v895
      %v897 = vpop.f32.mrb[0].mxu0
      %v898 = vadd.f32 %v706, %v897
      %899 = vmatprep.mubr.f32.mxu0 %v248
      %900 = vmatmul.mubr.f32.gmra.mrb[0].mxu0 %v246
      %v901 = vpop.f32.mrb[0].mxu0
      %v902 = vadd.f32 %v702, %v901
      %v903 = vpop.f32.mrb[0].mxu0
      %v904 = vadd.f32 %v706, %v903
      %905 = vmatprep.mubr.f32.mxu0 %v249
      %906 = vmatmul.mubr.f32.gmra.mrb[0].mxu0 %v247
      %v907 = vpop.f32.mrb[0].mxu0
      %v908 = vadd.f32 %v702, %v907
      %v909 = vpop.f32.mrb[0].mxu0
      %v910 = vadd.f32 %v706, %v909
      %911 = vmatprep.mubr.f32.mxu0 %v250
      %912 = vmatmul.mubr.f32.gmra.mrb[0].mxu0 %v248
      %v913 = vpop.f32.mrb[0].mxu0
      %v914 = vadd.f32 %v702, %v913
      %v915 = vpop.f32.mrb[0].mxu0
      %v916 = vadd.f32 %v706, %v915
      %917 = vmatprep.mubr.f32.mxu0 %v251
      %918 = vmatmul.mubr.f32.gmra.mrb[0].mxu0 %v249
      %v919 = vpop.f32.mrb[0].mxu0
      %v920 = vadd.f32 %v702, %v919
      %v921 = vpop.f32.mrb[0].mxu0
      %v922 = vadd.f32 %v706, %v921
      %923 = vmatprep.mubr.f32.mxu0 %v252
      %924 = vmatmul.mubr.f32.gmra.mrb[0].mxu0 %v250
      %v925 = vpop.f32.mrb[0].mxu0
      %v926 = vadd.f32 %v702, %v925
      %v927 = vpop.f32.mrb[0].mxu0
      %v928 = vadd.f32 %v706, %v927
      %929 = vmatprep.mubr.f32.mxu0 %v253
      %930 = vmatmul.mubr.f32.gmra.mrb[0].mxu0 %v251
      %v931 = vpop.f32.mrb[0].mxu0
      %v932 = vadd.f32 %v702, %v931
      %v933 = vpop.f32.mrb[0].mxu0
      %v934 = vadd.f32 %v706, %v933
      %935 = vmatprep.mubr.f32.mxu0 %v254
      %936 = vmatmul.mubr.f32.gmra.mrb[0].mxu0 %v252
      %v937 = vpop.f32.mrb[0].mxu0
      %v938 = vadd.f32 %v702, %v937
      %v939 = vpop.f32.mrb[0].mxu0
      %v940 = vadd.f32 %v706, %v939
      %941 = vmatprep.mubr.f32.mxu0 %v255
      %942 = vmatmul.mubr.f32.gmra.mrb[0].mxu0 %v253
      %v943 = vpop.f32.mrb[0].mxu0
      %v944 = vadd.f32 %v702, %v943
      %v945 = vpop.f32.mrb[0].mxu0
      %v946 = vadd.f32 %v706, %v945
      %947 = vmatprep.mubr.f32.mxu0 %v256
      %948 = vmatmul.mubr.f32.gmra.mrb[0].mxu0 %v254
      %v949 = vpop.f32.mrb[0].mxu0
      %v950 = vadd.f32 %v702, %v949
      %v951 = vpop.f32.mrb[0].mxu0
      %v952 = vadd.f32 %v706, %v951
      %953 = vmatprep.mubr.f32.mxu0 %v257
      %954 = vmatmul.mubr.f32.gmra.mrb[0].mxu0 %v255
      %v955 = vpop.f32.mrb[0].mxu0
      %v956 = vadd.f32 %v702, %v955
      %v957 = vpop.f32.mrb[0].mxu0
      %v958 = vadd.f32 %v706, %v957
      %959 = vmatprep.mubr.f32.mxu0 %v258
      %960 = vmatmul.mubr.f32.gmra.mrb[0].mxu0 %v256
      %v961 = vpop.f32.mrb[0].mxu0
      %v962 = vadd.f32 %v702, %v961
      %v963 = vpop.f32.mrb[0].mxu0
      %v964 = vadd.f32 %v706, %v963
      %965 = vdwg.mxu0
      %966 = vmatprep.subr.mxu0 %v474
      %967 = vmatpush1.msra.mxu0 %v473
      %968 = vmatprep.subr.mxu0 %v476
      %969 = vmatpush1.msra.mxu0 %v475
      %970 = vmatprep.subr.mxu0 %v478
      %971 = vmatpush1.msra.mxu0 %v477
      %972 = vmatprep.subr.mxu0 %v480
      %973 = vmatpush1.msra.mxu0 %v479
      %974 = vmatprep.subr.mxu0 %v482
      %975 = vmatpush1.msra.mxu0 %v481
      %976 = vmatprep.subr.mxu0 %v484
      %977 = vmatpush1.msra.mxu0 %v483
      %978 = vmatprep.subr.mxu0 %v486
      %979 = vmatpush1.msra.mxu0 %v485
      %980 = vmatprep.subr.mxu0 %v488
      %981 = vmatpush1.msra.mxu0 %v487
      %982 = vmatprep.subr.mxu0 %v490
      %983 = vmatpush1.msra.mxu0 %v489
      %984 = vmatprep.subr.mxu0 %v492
      %985 = vmatpush1.msra.mxu0 %v491
      %986 = vmatprep.subr.mxu0 %v494
      %987 = vmatpush1.msra.mxu0 %v493
      %988 = vmatprep.subr.mxu0 %v496
      %989 = vmatpush1.msra.mxu0 %v495
      %990 = vmatprep.subr.mxu0 %v498
      %991 = vmatpush1.msra.mxu0 %v497
      %992 = vmatprep.subr.mxu0 %v500
      %993 = vmatpush1.msra.mxu0 %v499
      %994 = vmatprep.subr.mxu0 %v502
      %995 = vmatpush1.msra.mxu0 %v501
      %996 = vmatprep.subr.mxu0 %v504
      %997 = vmatpush1.msra.mxu0 %v503
      %998 = vmatprep.subr.mxu0 %v506
      %999 = vmatpush1.msra.mxu0 %v505
      %1000 = vmatprep.subr.mxu0 %v508
      %1001 = vmatpush1.msra.mxu0 %v507
      %1002 = vmatprep.subr.mxu0 %v510
      %1003 = vmatpush1.msra.mxu0 %v509
      %1004 = vmatprep.subr.mxu0 %v512
      %1005 = vmatpush1.msra.mxu0 %v511
      %1006 = vmatprep.subr.mxu0 %v514
      %1007 = vmatpush1.msra.mxu0 %v513
      %1008 = vmatprep.subr.mxu0 %v516
      %1009 = vmatpush1.msra.mxu0 %v515
      %1010 = vmatprep.subr.mxu0 %v518
      %1011 = vmatpush1.msra.mxu0 %v517
      %1012 = vmatprep.subr.mxu0 %v520
      %1013 = vmatpush1.msra.mxu0 %v519
      %1014 = vmatprep.subr.mxu0 %v522
      %1015 = vmatpush1.msra.mxu0 %v521
      %1016 = vmatprep.subr.mxu0 %v524
      %1017 = vmatpush1.msra.mxu0 %v523
      %1018 = vmatprep.subr.mxu0 %v526
      %1019 = vmatpush1.msra.mxu0 %v525
      %1020 = vmatprep.subr.mxu0 %v528
      %1021 = vmatpush1.msra.mxu0 %v527
      %1022 = vmatprep.subr.mxu0 %v530
      %1023 = vmatpush1.msra.mxu0 %v529
      %1024 = vmatprep.subr.mxu0 %v532
      %1025 = vmatpush1.msra.mxu0 %v531
      %1026 = vmatprep.subr.mxu0 %v534
      %1027 = vmatpush1.msra.mxu0 %v533
      %1028 = vmatprep.subr.mxu0 %v536
      %1029 = vmatpush1.msra.mxu0 %v535
      %1030 = vmatprep.mubr.f32.mxu0 %v298
      %1031 = vmatmul.mubr.f32.gmra.mrb[0].mxu0 %v229
      %v1032 = vpop.f32.mrb[0].mxu0
      %v1033 = vadd.f32 %v776, %v1032
      %v1034 = vpop.f32.mrb[0].mxu0
      %v1035 = vadd.f32 %v778, %v1034
      %1036 = vmatprep.mubr.f32.mxu0 %v300
      %1037 = vmatmul.mubr.f32.gmra.mrb[0].mxu0 %v230
      %v1038 = vpop.f32.mrb[0].mxu0
      %v1039 = vadd.f32 %v782, %v1038
      %v1040 = vpop.f32.mrb[0].mxu0
      %v1041 = vadd.f32 %v784, %v1040
      %1042 = vmatprep.mubr.f32.mxu0 %v302
      %1043 = vmatmul.mubr.f32.gmra.mrb[0].mxu0 %v231
      %v1044 = vpop.f32.mrb[0].mxu0
      %v1045 = vadd.f32 %v788, %v1044
      %v1046 = vpop.f32.mrb[0].mxu0
      %v1047 = vadd.f32 %v790, %v1046
      %1048 = vmatprep.mubr.f32.mxu0 %v304
      %1049 = vmatmul.mubr.f32.gmra.mrb[0].mxu0 %v232
      %v1050 = vpop.f32.mrb[0].mxu0
      %v1051 = vadd.f32 %v794, %v1050
      %v1052 = vpop.f32.mrb[0].mxu0
      %v1053 = vadd.f32 %v796, %v1052
      %1054 = vmatprep.mubr.f32.mxu0 %v306
      %1055 = vmatmul.mubr.f32.gmra.mrb[0].mxu0 %v233
      %v1056 = vpop.f32.mrb[0].mxu0
      %v1057 = vadd.f32 %v800, %v1056
      %v1058 = vpop.f32.mrb[0].mxu0
      %v1059 = vadd.f32 %v802, %v1058
      %1060 = vmatprep.mubr.f32.mxu0 %v308
      %1061 = vmatmul.mubr.f32.gmra.mrb[0].mxu0 %v234
      %v1062 = vpop.f32.mrb[0].mxu0
      %v1063 = vadd.f32 %v806, %v1062
      %v1064 = vpop.f32.mrb[0].mxu0
      %v1065 = vadd.f32 %v808, %v1064
      %1066 = vmatprep.mubr.f32.mxu0 %v310
      %1067 = vmatmul.mubr.f32.gmra.mrb[0].mxu0 %v235
      %v1068 = vpop.f32.mrb[0].mxu0
      %v1069 = vadd.f32 %v812, %v1068
      %v1070 = vpop.f32.mrb[0].mxu0
      %v1071 = vadd.f32 %v814, %v1070
      %1072 = vmatprep.mubr.f32.mxu0 %v312
      %1073 = vmatmul.mubr.f32.gmra.mrb[0].mxu0 %v236
      %v1074 = vpop.f32.mrb[0].mxu0
      %v1075 = vadd.f32 %v818, %v1074
      %v1076 = vpop.f32.mrb[0].mxu0
      %v1077 = vadd.f32 %v820, %v1076
      %1078 = vmatprep.mubr.f32.mxu0 %v314
      %1079 = vmatmul.mubr.f32.gmra.mrb[0].mxu0 %v237
      %v1080 = vpop.f32.mrb[0].mxu0
      %v1081 = vadd.f32 %v824, %v1080
      %v1082 = vpop.f32.mrb[0].mxu0
      %v1083 = vadd.f32 %v826, %v1082
      %1084 = vmatprep.mubr.f32.mxu0 %v316
      %1085 = vmatmul.mubr.f32.gmra.mrb[0].mxu0 %v238
      %v1086 = vpop.f32.mrb[0].mxu0
      %v1087 = vadd.f32 %v830, %v1086
      %v1088 = vpop.f32.mrb[0].mxu0
      %v1089 = vadd.f32 %v832, %v1088
      %1090 = vmatprep.mubr.f32.mxu0 %v318
      %1091 = vmatmul.mubr.f32.gmra.mrb[0].mxu0 %v239
      %v1092 = vpop.f32.mrb[0].mxu0
      %v1093 = vadd.f32 %v836, %v1092
      %v1094 = vpop.f32.mrb[0].mxu0
      %v1095 = vadd.f32 %v838, %v1094
      %1096 = vmatprep.mubr.f32.mxu0 %v320
      %1097 = vmatmul.mubr.f32.gmra.mrb[0].mxu0 %v240
      %v1098 = vpop.f32.mrb[0].mxu0
      %v1099 = vadd.f32 %v842, %v1098
      %v1100 = vpop.f32.mrb[0].mxu0
      %v1101 = vadd.f32 %v844, %v1100
      %1102 = vmatprep.mubr.f32.mxu0 %v322
      %1103 = vmatmul.mubr.f32.gmra.mrb[0].mxu0 %v241
      %v1104 = vpop.f32.mrb[0].mxu0
      %v1105 = vadd.f32 %v848, %v1104
      %v1106 = vpop.f32.mrb[0].mxu0
      %v1107 = vadd.f32 %v850, %v1106
      %1108 = vmatprep.mubr.f32.mxu0 %v324
      %1109 = vmatmul.mubr.f32.gmra.mrb[0].mxu0 %v242
      %v1110 = vpop.f32.mrb[0].mxu0
      %v1111 = vadd.f32 %v854, %v1110
      %v1112 = vpop.f32.mrb[0].mxu0
      %v1113 = vadd.f32 %v856, %v1112
      %1114 = vmatprep.mubr.f32.mxu0 %v326
      %1115 = vmatmul.mubr.f32.gmra.mrb[0].mxu0 %v243
      %v1116 = vpop.f32.mrb[0].mxu0
      %v1117 = vadd.f32 %v860, %v1116
      %v1118 = vpop.f32.mrb[0].mxu0
      %v1119 = vadd.f32 %v862, %v1118
      %1120 = vmatprep.mubr.f32.mxu0 %v328
      %1121 = vmatmul.mubr.f32.gmra.mrb[0].mxu0 %v244
      %v1122 = vpop.f32.mrb[0].mxu0
      %v1123 = vadd.f32 %v866, %v1122
      %v1124 = vpop.f32.mrb[0].mxu0
      %v1125 = vadd.f32 %v868, %v1124
      %1126 = vmatprep.mubr.f32.mxu0 %v330
      %1127 = vmatmul.mubr.f32.gmra.mrb[0].mxu0 %v245
      %v1128 = vpop.f32.mrb[0].mxu0
      %v1129 = vadd.f32 %v872, %v1128
      %v1130 = vpop.f32.mrb[0].mxu0
      %v1131 = vadd.f32 %v874, %v1130
      %1132 = vmatprep.mubr.f32.mxu0 %v332
      %1133 = vmatmul.mubr.f32.gmra.mrb[0].mxu0 %v246
      %v1134 = vpop.f32.mrb[0].mxu0
      %v1135 = vadd.f32 %v878, %v1134
      %v1136 = vpop.f32.mrb[0].mxu0
      %v1137 = vadd.f32 %v880, %v1136
      %1138 = vmatprep.mubr.f32.mxu0 %v334
      %1139 = vmatmul.mubr.f32.gmra.mrb[0].mxu0 %v247
      %v1140 = vpop.f32.mrb[0].mxu0
      %v1141 = vadd.f32 %v884, %v1140
      %v1142 = vpop.f32.mrb[0].mxu0
      %v1143 = vadd.f32 %v886, %v1142
      %1144 = vmatprep.mubr.f32.mxu0 %v336
      %1145 = vmatmul.mubr.f32.gmra.mrb[0].mxu0 %v248
      %v1146 = vpop.f32.mrb[0].mxu0
      %v1147 = vadd.f32 %v890, %v1146
      %v1148 = vpop.f32.mrb[0].mxu0
      %v1149 = vadd.f32 %v892, %v1148
      %1150 = vmatprep.mubr.f32.mxu0 %v338
      %1151 = vmatmul.mubr.f32.gmra.mrb[0].mxu0 %v249
      %v1152 = vpop.f32.mrb[0].mxu0
      %v1153 = vadd.f32 %v896, %v1152
      %v1154 = vpop.f32.mrb[0].mxu0
      %v1155 = vadd.f32 %v898, %v1154
      %1156 = vmatprep.mubr.f32.mxu0 %v340
      %1157 = vmatmul.mubr.f32.gmra.mrb[0].mxu0 %v250
      %v1158 = vpop.f32.mrb[0].mxu0
      %v1159 = vadd.f32 %v902, %v1158
      %v1160 = vpop.f32.mrb[0].mxu0
      %v1161 = vadd.f32 %v904, %v1160
      %1162 = vmatprep.mubr.f32.mxu0 %v342
      %1163 = vmatmul.mubr.f32.gmra.mrb[0].mxu0 %v251
      %v1164 = vpop.f32.mrb[0].mxu0
      %v1165 = vadd.f32 %v908, %v1164
      %v1166 = vpop.f32.mrb[0].mxu0
      %v1167 = vadd.f32 %v910, %v1166
      %1168 = vmatprep.mubr.f32.mxu0 %v344
      %1169 = vmatmul.mubr.f32.gmra.mrb[0].mxu0 %v252
      %v1170 = vpop.f32.mrb[0].mxu0
      %v1171 = vadd.f32 %v914, %v1170
      %v1172 = vpop.f32.mrb[0].mxu0
      %v1173 = vadd.f32 %v916, %v1172
      %1174 = vmatprep.mubr.f32.mxu0 %v346
      %1175 = vmatmul.mubr.f32.gmra.mrb[0].mxu0 %v253
      %v1176 = vpop.f32.mrb[0].mxu0
      %v1177 = vadd.f32 %v920, %v1176
      %v1178 = vpop.f32.mrb[0].mxu0
      %v1179 = vadd.f32 %v922, %v1178
      %1180 = vmatprep.mubr.f32.mxu0 %v348
      %1181 = vmatmul.mubr.f32.gmra.mrb[0].mxu0 %v254
      %v1182 = vpop.f32.mrb[0].mxu0
      %v1183 = vadd.f32 %v926, %v1182
      %v1184 = vpop.f32.mrb[0].mxu0
      %v1185 = vadd.f32 %v928, %v1184
      %1186 = vmatprep.mubr.f32.mxu0 %v350
      %1187 = vmatmul.mubr.f32.gmra.mrb[0].mxu0 %v255
      %v1188 = vpop.f32.mrb[0].mxu0
      %v1189 = vadd.f32 %v932, %v1188
      %v1190 = vpop.f32.mrb[0].mxu0
      %v1191 = vadd.f32 %v934, %v1190
      %1192 = vmatprep.mubr.f32.mxu0 %v352
      %1193 = vmatmul.mubr.f32.gmra.mrb[0].mxu0 %v256
      %v1194 = vpop.f32.mrb[0].mxu0
      %v1195 = vadd.f32 %v938, %v1194
      %v1196 = vpop.f32.mrb[0].mxu0
      %v1197 = vadd.f32 %v940, %v1196
      %1198 = vmatprep.mubr.f32.mxu0 %v354
      %1199 = vmatmul.mubr.f32.gmra.mrb[0].mxu0 %v257
      %v1200 = vpop.f32.mrb[0].mxu0
      %v1201 = vadd.f32 %v944, %v1200
      %v1202 = vpop.f32.mrb[0].mxu0
      %v1203 = vadd.f32 %v946, %v1202
      %1204 = vmatprep.mubr.f32.mxu0 %v356
      %1205 = vmatmul.mubr.f32.gmra.mrb[0].mxu0 %v258
      %v1206 = vpop.f32.mrb[0].mxu0
      %v1207 = vadd.f32 %v950, %v1206
      %v1208 = vpop.f32.mrb[0].mxu0
      %v1209 = vadd.f32 %v952, %v1208
      %1210 = vmatprep.mubr.f32.mxu0 %v358
      %1211 = vmatmul.mubr.f32.gmra.mrb[0].mxu0 %v259
      %v1212 = vpop.f32.mrb[0].mxu0
      %v1213 = vadd.f32 %v956, %v1212
      %v1214 = vpop.f32.mrb[0].mxu0
      %v1215 = vadd.f32 %v958, %v1214
      %1216 = vmatprep.mubr.f32.mxu0 %v360
      %1217 = vmatmul.mubr.f32.gmra.mrb[0].mxu0 %v260
      %v1218 = vpop.f32.mrb[0].mxu0
      %v1219 = vadd.f32 %v962, %v1218
      %v1220 = vpop.f32.mrb[0].mxu0
      %v1221 = vadd.f32 %v964, %v1220
      %1222 = vdwg.mxu0
      %1223 = vmatprep.subr.mxu0 %v538
      %1224 = vmatpush1.msra.mxu0 %v537
      %1225 = vmatprep.subr.mxu0 %v540
      %1226 = vmatpush1.msra.mxu0 %v539
      %1227 = vmatprep.subr.mxu0 %v542
      %1228 = vmatpush1.msra.mxu0 %v541
      %1229 = vmatprep.subr.mxu0 %v544
      %1230 = vmatpush1.msra.mxu0 %v543
      %1231 = vmatprep.subr.mxu0 %v546
      %1232 = vmatpush1.msra.mxu0 %v545
      %1233 = vmatprep.subr.mxu0 %v548
      %1234 = vmatpush1.msra.mxu0 %v547
      %1235 = vmatprep.subr.mxu0 %v550
      %1236 = vmatpush1.msra.mxu0 %v549
      %1237 = vmatprep.subr.mxu0 %v552
      %1238 = vmatpush1.msra.mxu0 %v551
      %1239 = vmatprep.subr.mxu0 %v554
      %1240 = vmatpush1.msra.mxu0 %v553
      %1241 = vmatprep.subr.mxu0 %v556
      %1242 = vmatpush1.msra.mxu0 %v555
      %1243 = vmatprep.subr.mxu0 %v558
      %1244 = vmatpush1.msra.mxu0 %v557
      %1245 = vmatprep.subr.mxu0 %v560
      %1246 = vmatpush1.msra.mxu0 %v559
      %1247 = vmatprep.subr.mxu0 %v562
      %1248 = vmatpush1.msra.mxu0 %v561
      %1249 = vmatprep.subr.mxu0 %v564
      %1250 = vmatpush1.msra.mxu0 %v563
      %1251 = vmatprep.subr.mxu0 %v566
      %1252 = vmatpush1.msra.mxu0 %v565
      %1253 = vmatprep.subr.mxu0 %v568
      %1254 = vmatpush1.msra.mxu0 %v567
      %1255 = vmatprep.subr.mxu0 %v570
      %1256 = vmatpush1.msra.mxu0 %v569
      %1257 = vmatprep.subr.mxu0 %v572
      %1258 = vmatpush1.msra.mxu0 %v571
      %1259 = vmatprep.subr.mxu0 %v574
      %1260 = vmatpush1.msra.mxu0 %v573
      %1261 = vmatprep.subr.mxu0 %v576
      %1262 = vmatpush1.msra.mxu0 %v575
      %1263 = vmatprep.subr.mxu0 %v578
      %1264 = vmatpush1.msra.mxu0 %v577
      %1265 = vmatprep.subr.mxu0 %v580
      %1266 = vmatpush1.msra.mxu0 %v579
      %1267 = vmatprep.subr.mxu0 %v582
      %1268 = vmatpush1.msra.mxu0 %v581
      %1269 = vmatprep.subr.mxu0 %v584
      %1270 = vmatpush1.msra.mxu0 %v583
      %1271 = vmatprep.subr.mxu0 %v586
      %1272 = vmatpush1.msra.mxu0 %v585
      %1273 = vmatprep.subr.mxu0 %v588
      %1274 = vmatpush1.msra.mxu0 %v587
      %1275 = vmatprep.subr.mxu0 %v590
      %1276 = vmatpush1.msra.mxu0 %v589
      %1277 = vmatprep.subr.mxu0 %v592
      %1278 = vmatpush1.msra.mxu0 %v591
      %1279 = vmatprep.subr.mxu0 %v594
      %1280 = vmatpush1.msra.mxu0 %v593
      %1281 = vmatprep.subr.mxu0 %v596
      %1282 = vmatpush1.msra.mxu0 %v595
      %1283 = vmatprep.subr.mxu0 %v598
      %1284 = vmatpush1.msra.mxu0 %v597
      %1285 = vmatprep.subr.mxu0 %v600
      %1286 = vmatpush1.msra.mxu0 %v599
      %1287 = vmatprep.mubr.f32.mxu0 %v306
      %1288 = vmatmul.mubr.f32.gmra.mrb[0].mxu0 %v302
      %v1289 = vpop.f32.mrb[0].mxu0
      %v1290 = vadd.f32 %v1033, %v1289
      %v1291 = vpop.f32.mrb[0].mxu0
      %v1292 = vadd.f32 %v1035, %v1291
      %1293 = vmatprep.mubr.f32.mxu0 %v308
      %1294 = vmatmul.mubr.f32.gmra.mrb[0].mxu0 %v304
      %v1295 = vpop.f32.mrb[0].mxu0
      %v1296 = vadd.f32 %v1039, %v1295
      %v1297 = vpop.f32.mrb[0].mxu0
      %v1298 = vadd.f32 %v1041, %v1297
      %1299 = vmatprep.mubr.f32.mxu0 %v310
      %1300 = vmatmul.mubr.f32.gmra.mrb[0].mxu0 %v306
      %v1301 = vpop.f32.mrb[0].mxu0
      %v1302 = vadd.f32 %v1045, %v1301
      %v1303 = vpop.f32.mrb[0].mxu0
      %v1304 = vadd.f32 %v1047, %v1303
      %1305 = vmatprep.mubr.f32.mxu0 %v312
      %1306 = vmatmul.mubr.f32.gmra.mrb[0].mxu0 %v308
      %v1307 = vpop.f32.mrb[0].mxu0
      %v1308 = vadd.f32 %v1051, %v1307
      %v1309 = vpop.f32.mrb[0].mxu0
      %v1310 = vadd.f32 %v1053, %v1309
      %1311 = vmatprep.mubr.f32.mxu0 %v314
      %1312 = vmatmul.mubr.f32.gmra.mrb[0].mxu0 %v310
      %v1313 = vpop.f32.mrb[0].mxu0
      %v1314 = vadd.f32 %v1057, %v1313
      %v1315 = vpop.f32.mrb[0].mxu0
      %v1316 = vadd.f32 %v1059, %v1315
      %1317 = vmatprep.mubr.f32.mxu0 %v316
      %1318 = vmatmul.mubr.f32.gmra.mrb[0].mxu0 %v312
      %v1319 = vpop.f32.mrb[0].mxu0
      %v1320 = vadd.f32 %v1063, %v1319
      %v1321 = vpop.f32.mrb[0].mxu0
      %v1322 = vadd.f32 %v1065, %v1321
      %1323 = vmatprep.mubr.f32.mxu0 %v318
      %1324 = vmatmul.mubr.f32.gmra.mrb[0].mxu0 %v314
      %v1325 = vpop.f32.mrb[0].mxu0
      %v1326 = vadd.f32 %v1069, %v1325
      %v1327 = vpop.f32.mrb[0].mxu0
      %v1328 = vadd.f32 %v1071, %v1327
      %1329 = vmatprep.mubr.f32.mxu0 %v320
      %1330 = vmatmul.mubr.f32.gmra.mrb[0].mxu0 %v316
      %v1331 = vpop.f32.mrb[0].mxu0
      %v1332 = vadd.f32 %v1075, %v1331
      %v1333 = vpop.f32.mrb[0].mxu0
      %v1334 = vadd.f32 %v1077, %v1333
      %1335 = vmatprep.mubr.f32.mxu0 %v322
      %1336 = vmatmul.mubr.f32.gmra.mrb[0].mxu0 %v318
      %v1337 = vpop.f32.mrb[0].mxu0
      %v1338 = vadd.f32 %v1081, %v1337
      %v1339 = vpop.f32.mrb[0].mxu0
      %v1340 = vadd.f32 %v1083, %v1339
      %1341 = vmatprep.mubr.f32.mxu0 %v324
      %1342 = vmatmul.mubr.f32.gmra.mrb[0].mxu0 %v320
      %v1343 = vpop.f32.mrb[0].mxu0
      %v1344 = vadd.f32 %v1087, %v1343
      %v1345 = vpop.f32.mrb[0].mxu0
      %v1346 = vadd.f32 %v1089, %v1345
      %1347 = vmatprep.mubr.f32.mxu0 %v326
      %1348 = vmatmul.mubr.f32.gmra.mrb[0].mxu0 %v322
      %v1349 = vpop.f32.mrb[0].mxu0
      %v1350 = vadd.f32 %v1093, %v1349
      %v1351 = vpop.f32.mrb[0].mxu0
      %v1352 = vadd.f32 %v1095, %v1351
      %1353 = vmatprep.mubr.f32.mxu0 %v328
      %1354 = vmatmul.mubr.f32.gmra.mrb[0].mxu0 %v324
      %v1355 = vpop.f32.mrb[0].mxu0
      %v1356 = vadd.f32 %v1099, %v1355
      %v1357 = vpop.f32.mrb[0].mxu0
      %v1358 = vadd.f32 %v1101, %v1357
      %1359 = vmatprep.mubr.f32.mxu0 %v330
      %1360 = vmatmul.mubr.f32.gmra.mrb[0].mxu0 %v326
      %v1361 = vpop.f32.mrb[0].mxu0
      %v1362 = vadd.f32 %v1105, %v1361
      %v1363 = vpop.f32.mrb[0].mxu0
      %v1364 = vadd.f32 %v1107, %v1363
      %1365 = vmatprep.mubr.f32.mxu0 %v332
      %1366 = vmatmul.mubr.f32.gmra.mrb[0].mxu0 %v328
      %v1367 = vpop.f32.mrb[0].mxu0
      %v1368 = vadd.f32 %v1111, %v1367
      %v1369 = vpop.f32.mrb[0].mxu0
      %v1370 = vadd.f32 %v1113, %v1369
      %1371 = vmatprep.mubr.f32.mxu0 %v334
      %1372 = vmatmul.mubr.f32.gmra.mrb[0].mxu0 %v330
      %v1373 = vpop.f32.mrb[0].mxu0
      %v1374 = vadd.f32 %v1117, %v1373
      %v1375 = vpop.f32.mrb[0].mxu0
      %v1376 = vadd.f32 %v1119, %v1375
      %1377 = vmatprep.mubr.f32.mxu0 %v336
      %1378 = vmatmul.mubr.f32.gmra.mrb[0].mxu0 %v332
      %v1379 = vpop.f32.mrb[0].mxu0
      %v1380 = vadd.f32 %v1123, %v1379
      %v1381 = vpop.f32.mrb[0].mxu0
      %v1382 = vadd.f32 %v1125, %v1381
      %1383 = vmatprep.mubr.f32.mxu0 %v338
      %1384 = vmatmul.mubr.f32.gmra.mrb[0].mxu0 %v334
      %v1385 = vpop.f32.mrb[0].mxu0
      %v1386 = vadd.f32 %v1129, %v1385
      %v1387 = vpop.f32.mrb[0].mxu0
      %v1388 = vadd.f32 %v1131, %v1387
      %1389 = vmatprep.mubr.f32.mxu0 %v340
      %1390 = vmatmul.mubr.f32.gmra.mrb[0].mxu0 %v336
      %v1391 = vpop.f32.mrb[0].mxu0
      %v1392 = vadd.f32 %v1135, %v1391
      %v1393 = vpop.f32.mrb[0].mxu0
      %v1394 = vadd.f32 %v1137, %v1393
      %1395 = vmatprep.mubr.f32.mxu0 %v342
      %1396 = vmatmul.mubr.f32.gmra.mrb[0].mxu0 %v338
      %v1397 = vpop.f32.mrb[0].mxu0
      %v1398 = vadd.f32 %v1141, %v1397
      %v1399 = vpop.f32.mrb[0].mxu0
      %v1400 = vadd.f32 %v1143, %v1399
      %1401 = vmatprep.mubr.f32.mxu0 %v344
      %1402 = vmatmul.mubr.f32.gmra.mrb[0].mxu0 %v340
      %v1403 = vpop.f32.mrb[0].mxu0
      %v1404 = vadd.f32 %v1147, %v1403
      %v1405 = vpop.f32.mrb[0].mxu0
      %v1406 = vadd.f32 %v1149, %v1405
      %1407 = vmatprep.mubr.f32.mxu0 %v346
      %1408 = vmatmul.mubr.f32.gmra.mrb[0].mxu0 %v342
      %v1409 = vpop.f32.mrb[0].mxu0
      %v1410 = vadd.f32 %v1153, %v1409
      %v1411 = vpop.f32.mrb[0].mxu0
      %v1412 = vadd.f32 %v1155, %v1411
      %1413 = vmatprep.mubr.f32.mxu0 %v348
      %1414 = vmatmul.mubr.f32.gmra.mrb[0].mxu0 %v344
      %v1415 = vpop.f32.mrb[0].mxu0
      %v1416 = vadd.f32 %v1159, %v1415
      %v1417 = vpop.f32.mrb[0].mxu0
      %v1418 = vadd.f32 %v1161, %v1417
      %1419 = vmatprep.mubr.f32.mxu0 %v350
      %1420 = vmatmul.mubr.f32.gmra.mrb[0].mxu0 %v346
      %v1421 = vpop.f32.mrb[0].mxu0
      %v1422 = vadd.f32 %v1165, %v1421
      %v1423 = vpop.f32.mrb[0].mxu0
      %v1424 = vadd.f32 %v1167, %v1423
      %1425 = vmatprep.mubr.f32.mxu0 %v352
      %1426 = vmatmul.mubr.f32.gmra.mrb[0].mxu0 %v348
      %v1427 = vpop.f32.mrb[0].mxu0
      %v1428 = vadd.f32 %v1171, %v1427
      %v1429 = vpop.f32.mrb[0].mxu0
      %v1430 = vadd.f32 %v1173, %v1429
      %1431 = vmatprep.mubr.f32.mxu0 %v354
      %1432 = vmatmul.mubr.f32.gmra.mrb[0].mxu0 %v350
      %v1433 = vpop.f32.mrb[0].mxu0
      %v1434 = vadd.f32 %v1177, %v1433
      %v1435 = vpop.f32.mrb[0].mxu0
      %v1436 = vadd.f32 %v1179, %v1435
      %1437 = vmatprep.mubr.f32.mxu0 %v356
      %1438 = vmatmul.mubr.f32.gmra.mrb[0].mxu0 %v352
      %v1439 = vpop.f32.mrb[0].mxu0
      %v1440 = vadd.f32 %v1183, %v1439
      %v1441 = vpop.f32.mrb[0].mxu0
      %v1442 = vadd.f32 %v1185, %v1441
      %1443 = vmatprep.mubr.f32.mxu0 %v358
      %1444 = vmatmul.mubr.f32.gmra.mrb[0].mxu0 %v354
      %v1445 = vpop.f32.mrb[0].mxu0
      %v1446 = vadd.f32 %v1189, %v1445
      %v1447 = vpop.f32.mrb[0].mxu0
      %v1448 = vadd.f32 %v1191, %v1447
      %1449 = vmatprep.mubr.f32.mxu0 %v360
      %1450 = vmatmul.mubr.f32.gmra.mrb[0].mxu0 %v356
      %v1451 = vpop.f32.mrb[0].mxu0
      %v1452 = vadd.f32 %v1195, %v1451
      %v1453 = vpop.f32.mrb[0].mxu0
      %v1454 = vadd.f32 %v1197, %v1453
      %1455 = vmatprep.mubr.f32.mxu0 %v396
      %1456 = vmatmul.mubr.f32.gmra.mrb[0].mxu0 %v358
      %v1457 = vpop.f32.mrb[0].mxu0
      %v1458 = vadd.f32 %v1201, %v1457
      %v1459 = vpop.f32.mrb[0].mxu0
      %v1460 = vadd.f32 %v1203, %v1459
      %1461 = vmatprep.mubr.f32.mxu0 %v398
      %1462 = vmatmul.mubr.f32.gmra.mrb[0].mxu0 %v360
      %v1463 = vpop.f32.mrb[0].mxu0
      %v1464 = vadd.f32 %v1207, %v1463
      %v1465 = vpop.f32.mrb[0].mxu0
      %v1466 = vadd.f32 %v1209, %v1465
      %1467 = vmatprep.mubr.f32.mxu0 %v404
      %1468 = vmatmul.mubr.f32.gmra.mrb[0].mxu0 %v396
      %v1469 = vpop.f32.mrb[0].mxu0
      %v1470 = vadd.f32 %v1213, %v1469
      %v1471 = vpop.f32.mrb[0].mxu0
      %v1472 = vadd.f32 %v1215, %v1471
      %1473 = vmatprep.mubr.f32.mxu0 %v406
      %1474 = vmatmul.mubr.f32.gmra.mrb[0].mxu0 %v398
      %v1475 = vpop.f32.mrb[0].mxu0
      %v1476 = vadd.f32 %v1219, %v1475
      %v1477 = vpop.f32.mrb[0].mxu0
      %v1478 = vadd.f32 %v1221, %v1477
      %1479 = vdwg.mxu0
      %1480 = vmatprep.subr.mxu0 %v602
      %1481 = vmatpush1.msra.mxu0 %v601
      %1482 = vmatprep.subr.mxu0 %v604
      %1483 = vmatpush1.msra.mxu0 %v603
      %1484 = vmatprep.subr.mxu0 %v606
      %1485 = vmatpush1.msra.mxu0 %v605
      %1486 = vmatprep.subr.mxu0 %v608
      %1487 = vmatpush1.msra.mxu0 %v607
      %1488 = vmatprep.subr.mxu0 %v610
      %1489 = vmatpush1.msra.mxu0 %v609
      %1490 = vmatprep.subr.mxu0 %v612
      %1491 = vmatpush1.msra.mxu0 %v611
      %1492 = vmatprep.subr.mxu0 %v614
      %1493 = vmatpush1.msra.mxu0 %v613
      %1494 = vmatprep.subr.mxu0 %v616
      %1495 = vmatpush1.msra.mxu0 %v615
      %1496 = vmatprep.subr.mxu0 %v618
      %1497 = vmatpush1.msra.mxu0 %v617
      %1498 = vmatprep.subr.mxu0 %v620
      %1499 = vmatpush1.msra.mxu0 %v619
      %1500 = vmatprep.subr.mxu0 %v622
      %1501 = vmatpush1.msra.mxu0 %v621
      %1502 = vmatprep.subr.mxu0 %v624
      %1503 = vmatpush1.msra.mxu0 %v623
      %1504 = vmatprep.subr.mxu0 %v626
      %1505 = vmatpush1.msra.mxu0 %v625
      %1506 = vmatprep.subr.mxu0 %v628
      %1507 = vmatpush1.msra.mxu0 %v627
      %1508 = vmatprep.subr.mxu0 %v630
      %1509 = vmatpush1.msra.mxu0 %v629
      %1510 = vmatprep.subr.mxu0 %v632
      %1511 = vmatpush1.msra.mxu0 %v631
      %1512 = vmatprep.subr.mxu0 %v634
      %1513 = vmatpush1.msra.mxu0 %v633
      %1514 = vmatprep.subr.mxu0 %v636
      %1515 = vmatpush1.msra.mxu0 %v635
      %1516 = vmatprep.subr.mxu0 %v638
      %1517 = vmatpush1.msra.mxu0 %v637
      %1518 = vmatprep.subr.mxu0 %v640
      %1519 = vmatpush1.msra.mxu0 %v639
      %1520 = vmatprep.subr.mxu0 %v642
      %1521 = vmatpush1.msra.mxu0 %v641
      %1522 = vmatprep.subr.mxu0 %v644
      %1523 = vmatpush1.msra.mxu0 %v643
      %1524 = vmatprep.subr.mxu0 %v646
      %1525 = vmatpush1.msra.mxu0 %v645
      %1526 = vmatprep.subr.mxu0 %v648
      %1527 = vmatpush1.msra.mxu0 %v647
      %1528 = vmatprep.subr.mxu0 %v650
      %1529 = vmatpush1.msra.mxu0 %v649
      %1530 = vmatprep.subr.mxu0 %v652
      %1531 = vmatpush1.msra.mxu0 %v651
      %1532 = vmatprep.subr.mxu0 %v654
      %1533 = vmatpush1.msra.mxu0 %v653
      %1534 = vmatprep.subr.mxu0 %v656
      %1535 = vmatpush1.msra.mxu0 %v655
      %1536 = vmatprep.subr.mxu0 %v658
      %1537 = vmatpush1.msra.mxu0 %v657
      %1538 = vmatprep.subr.mxu0 %v660
      %1539 = vmatpush1.msra.mxu0 %v659
      %1540 = vmatprep.subr.mxu0 %v662
      %1541 = vmatpush1.msra.mxu0 %v661
      %1542 = vmatprep.subr.mxu0 %v664
      %1543 = vmatpush1.msra.mxu0 %v663
      %1544 = vmatprep.mubr.f32.mxu0 %v302
      %1545 = vmatmul.mubr.f32.gmra.mrb[0].mxu0 %v298
      %v1546 = vpop.f32.mrb[0].mxu0
      %v1547 = vadd.f32 %v702, %v1546
      %v1548 = vpop.f32.mrb[0].mxu0
      %v1549 = vadd.f32 %v706, %v1548
      %1550 = vmatprep.mubr.f32.mxu0 %v304
      %1551 = vmatmul.mubr.f32.gmra.mrb[0].mxu0 %v300
      %v1552 = vpop.f32.mrb[0].mxu0
      %v1553 = vadd.f32 %v702, %v1552
      %v1554 = vpop.f32.mrb[0].mxu0
      %v1555 = vadd.f32 %v706, %v1554
      %1556 = vmatprep.mubr.f32.mxu0 %v306
      %1557 = vmatmul.mubr.f32.gmra.mrb[0].mxu0 %v302
      %v1558 = vpop.f32.mrb[0].mxu0
      %v1559 = vadd.f32 %v702, %v1558
      %v1560 = vpop.f32.mrb[0].mxu0
      %v1561 = vadd.f32 %v706, %v1560
      %1562 = vmatprep.mubr.f32.mxu0 %v308
      %1563 = vmatmul.mubr.f32.gmra.mrb[0].mxu0 %v304
      %v1564 = vpop.f32.mrb[0].mxu0
      %v1565 = vadd.f32 %v702, %v1564
      %v1566 = vpop.f32.mrb[0].mxu0
      %v1567 = vadd.f32 %v706, %v1566
      %1568 = vmatprep.mubr.f32.mxu0 %v310
      %1569 = vmatmul.mubr.f32.gmra.mrb[0].mxu0 %v306
      %v1570 = vpop.f32.mrb[0].mxu0
      %v1571 = vadd.f32 %v702, %v1570
      %v1572 = vpop.f32.mrb[0].mxu0
      %v1573 = vadd.f32 %v706, %v1572
      %1574 = vmatprep.mubr.f32.mxu0 %v312
      %1575 = vmatmul.mubr.f32.gmra.mrb[0].mxu0 %v308
      %v1576 = vpop.f32.mrb[0].mxu0
      %v1577 = vadd.f32 %v702, %v1576
      %v1578 = vpop.f32.mrb[0].mxu0
      %v1579 = vadd.f32 %v706, %v1578
      %1580 = vmatprep.mubr.f32.mxu0 %v314
      %1581 = vmatmul.mubr.f32.gmra.mrb[0].mxu0 %v310
      %v1582 = vpop.f32.mrb[0].mxu0
      %v1583 = vadd.f32 %v702, %v1582
      %v1584 = vpop.f32.mrb[0].mxu0
      %v1585 = vadd.f32 %v706, %v1584
      %1586 = vmatprep.mubr.f32.mxu0 %v316
      %1587 = vmatmul.mubr.f32.gmra.mrb[0].mxu0 %v312
      %v1588 = vpop.f32.mrb[0].mxu0
      %v1589 = vadd.f32 %v702, %v1588
      %v1590 = vpop.f32.mrb[0].mxu0
      %v1591 = vadd.f32 %v706, %v1590
      %1592 = vmatprep.mubr.f32.mxu0 %v318
      %1593 = vmatmul.mubr.f32.gmra.mrb[0].mxu0 %v314
      %v1594 = vpop.f32.mrb[0].mxu0
      %v1595 = vadd.f32 %v702, %v1594
      %v1596 = vpop.f32.mrb[0].mxu0
      %v1597 = vadd.f32 %v706, %v1596
      %1598 = vmatprep.mubr.f32.mxu0 %v320
      %1599 = vmatmul.mubr.f32.gmra.mrb[0].mxu0 %v316
      %v1600 = vpop.f32.mrb[0].mxu0
      %v1601 = vadd.f32 %v702, %v1600
      %v1602 = vpop.f32.mrb[0].mxu0
      %v1603 = vadd.f32 %v706, %v1602
      %1604 = vmatprep.mubr.f32.mxu0 %v322
      %1605 = vmatmul.mubr.f32.gmra.mrb[0].mxu0 %v318
      %v1606 = vpop.f32.mrb[0].mxu0
      %v1607 = vadd.f32 %v702, %v1606
      %v1608 = vpop.f32.mrb[0].mxu0
      %v1609 = vadd.f32 %v706, %v1608
      %1610 = vmatprep.mubr.f32.mxu0 %v324
      %1611 = vmatmul.mubr.f32.gmra.mrb[0].mxu0 %v320
      %v1612 = vpop.f32.mrb[0].mxu0
      %v1613 = vadd.f32 %v702, %v1612
      %v1614 = vpop.f32.mrb[0].mxu0
      %v1615 = vadd.f32 %v706, %v1614
      %1616 = vmatprep.mubr.f32.mxu0 %v326
      %1617 = vmatmul.mubr.f32.gmra.mrb[0].mxu0 %v322
      %v1618 = vpop.f32.mrb[0].mxu0
      %v1619 = vadd.f32 %v702, %v1618
      %v1620 = vpop.f32.mrb[0].mxu0
      %v1621 = vadd.f32 %v706, %v1620
      %1622 = vmatprep.mubr.f32.mxu0 %v328
      %1623 = vmatmul.mubr.f32.gmra.mrb[0].mxu0 %v324
      %v1624 = vpop.f32.mrb[0].mxu0
      %v1625 = vadd.f32 %v702, %v1624
      %v1626 = vpop.f32.mrb[0].mxu0
      %v1627 = vadd.f32 %v706, %v1626
      %1628 = vmatprep.mubr.f32.mxu0 %v330
      %1629 = vmatmul.mubr.f32.gmra.mrb[0].mxu0 %v326
      %v1630 = vpop.f32.mrb[0].mxu0
      %v1631 = vadd.f32 %v702, %v1630
      %v1632 = vpop.f32.mrb[0].mxu0
      %v1633 = vadd.f32 %v706, %v1632
      %1634 = vmatprep.mubr.f32.mxu0 %v332
      %1635 = vmatmul.mubr.f32.gmra.mrb[0].mxu0 %v328
      %v1636 = vpop.f32.mrb[0].mxu0
      %v1637 = vadd.f32 %v702, %v1636
      %v1638 = vpop.f32.mrb[0].mxu0
      %v1639 = vadd.f32 %v706, %v1638
      %1640 = vmatprep.mubr.f32.mxu0 %v334
      %1641 = vmatmul.mubr.f32.gmra.mrb[0].mxu0 %v330
      %v1642 = vpop.f32.mrb[0].mxu0
      %v1643 = vadd.f32 %v702, %v1642
      %v1644 = vpop.f32.mrb[0].mxu0
      %v1645 = vadd.f32 %v706, %v1644
      %1646 = vmatprep.mubr.f32.mxu0 %v336
      %1647 = vmatmul.mubr.f32.gmra.mrb[0].mxu0 %v332
      %v1648 = vpop.f32.mrb[0].mxu0
      %v1649 = vadd.f32 %v702, %v1648
      %v1650 = vpop.f32.mrb[0].mxu0
      %v1651 = vadd.f32 %v706, %v1650
      %1652 = vmatprep.mubr.f32.mxu0 %v338
      %1653 = vmatmul.mubr.f32.gmra.mrb[0].mxu0 %v334
      %v1654 = vpop.f32.mrb[0].mxu0
      %v1655 = vadd.f32 %v702, %v1654
      %v1656 = vpop.f32.mrb[0].mxu0
      %v1657 = vadd.f32 %v706, %v1656
      %1658 = vmatprep.mubr.f32.mxu0 %v340
      %1659 = vmatmul.mubr.f32.gmra.mrb[0].mxu0 %v336
      %v1660 = vpop.f32.mrb[0].mxu0
      %v1661 = vadd.f32 %v702, %v1660
      %v1662 = vpop.f32.mrb[0].mxu0
      %v1663 = vadd.f32 %v706, %v1662
      %1664 = vmatprep.mubr.f32.mxu0 %v342
      %1665 = vmatmul.mubr.f32.gmra.mrb[0].mxu0 %v338
      %v1666 = vpop.f32.mrb[0].mxu0
      %v1667 = vadd.f32 %v702, %v1666
      %v1668 = vpop.f32.mrb[0].mxu0
      %v1669 = vadd.f32 %v706, %v1668
      %1670 = vmatprep.mubr.f32.mxu0 %v344
      %1671 = vmatmul.mubr.f32.gmra.mrb[0].mxu0 %v340
      %v1672 = vpop.f32.mrb[0].mxu0
      %v1673 = vadd.f32 %v702, %v1672
      %v1674 = vpop.f32.mrb[0].mxu0
      %v1675 = vadd.f32 %v706, %v1674
      %1676 = vmatprep.mubr.f32.mxu0 %v346
      %1677 = vmatmul.mubr.f32.gmra.mrb[0].mxu0 %v342
      %v1678 = vpop.f32.mrb[0].mxu0
      %v1679 = vadd.f32 %v702, %v1678
      %v1680 = vpop.f32.mrb[0].mxu0
      %v1681 = vadd.f32 %v706, %v1680
      %1682 = vmatprep.mubr.f32.mxu0 %v348
      %1683 = vmatmul.mubr.f32.gmra.mrb[0].mxu0 %v344
      %v1684 = vpop.f32.mrb[0].mxu0
      %v1685 = vadd.f32 %v702, %v1684
      %v1686 = vpop.f32.mrb[0].mxu0
      %v1687 = vadd.f32 %v706, %v1686
      %1688 = vmatprep.mubr.f32.mxu0 %v350
      %1689 = vmatmul.mubr.f32.gmra.mrb[0].mxu0 %v346
      %v1690 = vpop.f32.mrb[0].mxu0
      %v1691 = vadd.f32 %v702, %v1690
      %v1692 = vpop.f32.mrb[0].mxu0
      %v1693 = vadd.f32 %v706, %v1692
      %1694 = vmatprep.mubr.f32.mxu0 %v352
      %1695 = vmatmul.mubr.f32.gmra.mrb[0].mxu0 %v348
      %v1696 = vpop.f32.mrb[0].mxu0
      %v1697 = vadd.f32 %v702, %v1696
      %v1698 = vpop.f32.mrb[0].mxu0
      %v1699 = vadd.f32 %v706, %v1698
      %1700 = vmatprep.mubr.f32.mxu0 %v354
      %1701 = vmatmul.mubr.f32.gmra.mrb[0].mxu0 %v350
      %v1702 = vpop.f32.mrb[0].mxu0
      %v1703 = vadd.f32 %v702, %v1702
      %v1704 = vpop.f32.mrb[0].mxu0
      %v1705 = vadd.f32 %v706, %v1704
      %1706 = vmatprep.mubr.f32.mxu0 %v356
      %1707 = vmatmul.mubr.f32.gmra.mrb[0].mxu0 %v352
      %v1708 = vpop.f32.mrb[0].mxu0
      %v1709 = vadd.f32 %v702, %v1708
      %v1710 = vpop.f32.mrb[0].mxu0
      %v1711 = vadd.f32 %v706, %v1710
      %1712 = vmatprep.mubr.f32.mxu0 %v358
      %1713 = vmatmul.mubr.f32.gmra.mrb[0].mxu0 %v354
      %v1714 = vpop.f32.mrb[0].mxu0
      %v1715 = vadd.f32 %v702, %v1714
      %v1716 = vpop.f32.mrb[0].mxu0
      %v1717 = vadd.f32 %v706, %v1716
      %1718 = vmatprep.mubr.f32.mxu0 %v360
      %1719 = vmatmul.mubr.f32.gmra.mrb[0].mxu0 %v356
      %v1720 = vpop.f32.mrb[0].mxu0
      %v1721 = vadd.f32 %v702, %v1720
      %v1722 = vpop.f32.mrb[0].mxu0
      %v1723 = vadd.f32 %v706, %v1722
      %1724 = vmatprep.mubr.f32.mxu0 %v396
      %1725 = vmatmul.mubr.f32.gmra.mrb[0].mxu0 %v358
      %v1726 = vpop.f32.mrb[0].mxu0
      %v1727 = vadd.f32 %v702, %v1726
      %v1728 = vpop.f32.mrb[0].mxu0
      %v1729 = vadd.f32 %v706, %v1728
      %1730 = vmatprep.mubr.f32.mxu0 %v398
      %1731 = vmatmul.mubr.f32.gmra.mrb[0].mxu0 %v360
      %v1732 = vpop.f32.mrb[0].mxu0
      %v1733 = vadd.f32 %v702, %v1732
      %v1734 = vpop.f32.mrb[0].mxu0
      %v1735 = vadd.f32 %v706, %v1734
      %1736 = vdwg.mxu0
      %1737 = vmatprep.subr.mxu0 %v666
      %1738 = vmatpush1.msra.mxu0 %v665
      %1739 = vmatprep.subr.mxu0 %v668
      %1740 = vmatpush1.msra.mxu0 %v667
      %1741 = vmatprep.subr.mxu0 %v670
      %1742 = vmatpush1.msra.mxu0 %v669
      %1743 = vmatprep.subr.mxu0 %v672
      %1744 = vmatpush1.msra.mxu0 %v671
      %1745 = vmatprep.subr.mxu0 %v674
      %1746 = vmatpush1.msra.mxu0 %v673
      %1747 = vmatprep.subr.mxu0 %v676
      %1748 = vmatpush1.msra.mxu0 %v675
      %1749 = vmatprep.subr.mxu0 %v678
      %1750 = vmatpush1.msra.mxu0 %v677
      %1751 = vmatprep.subr.mxu0 %v680
      %1752 = vmatpush1.msra.mxu0 %v679
      %1753 = vmatprep.subr.mxu0 %v682
      %1754 = vmatpush1.msra.mxu0 %v681
      %1755 = vmatprep.subr.mxu0 %v684
      %1756 = vmatpush1.msra.mxu0 %v683
      %1757 = vmatprep.subr.mxu0 %v686
      %1758 = vmatpush1.msra.mxu0 %v685
      %1759 = vmatprep.subr.mxu0 %v688
      %1760 = vmatpush1.msra.mxu0 %v687
      %1761 = vmatprep.subr.mxu0 %v690
      %1762 = vmatpush1.msra.mxu0 %v689
      %1763 = vmatprep.subr.mxu0 %v692
      %1764 = vmatpush1.msra.mxu0 %v691
      %1765 = vmatprep.subr.mxu0 %v694
      %1766 = vmatpush1.msra.mxu0 %v693
      %1767 = vmatprep.subr.mxu0 %v696
      %1768 = vmatpush1.msra.mxu0 %v695
      %1769 = vmatprep.subr.mxu0 0.0
      %1770 = vmatpush1.msra.mxu0 0.0
      %1771 = vmatprep.subr.mxu0 0.0
      %1772 = vmatpush1.msra.mxu0 0.0
      %1773 = vmatprep.subr.mxu0 0.0
      %1774 = vmatpush1.msra.mxu0 0.0
      %1775 = vmatprep.subr.mxu0 0.0
      %1776 = vmatpush1.msra.mxu0 0.0
      %1777 = vmatprep.subr.mxu0 0.0
      %1778 = vmatpush1.msra.mxu0 0.0
      %1779 = vmatprep.subr.mxu0 0.0
      %1780 = vmatpush1.msra.mxu0 0.0
      %1781 = vmatprep.subr.mxu0 0.0
      %1782 = vmatpush1.msra.mxu0 0.0
      %1783 = vmatprep.subr.mxu0 0.0
      %1784 = vmatpush1.msra.mxu0 0.0
      %1785 = vmatprep.subr.mxu0 0.0
      %1786 = vmatpush1.msra.mxu0 0.0
      %1787 = vmatprep.subr.mxu0 0.0
      %1788 = vmatpush1.msra.mxu0 0.0
      %1789 = vmatprep.subr.mxu0 0.0
      %1790 = vmatpush1.msra.mxu0 0.0
      %1791 = vmatprep.subr.mxu0 0.0
      %1792 = vmatpush1.msra.mxu0 0.0
      %1793 = vmatprep.subr.mxu0 0.0
      %1794 = vmatpush1.msra.mxu0 0.0
      %1795 = vmatprep.subr.mxu0 0.0
      %1796 = vmatpush1.msra.mxu0 0.0
      %1797 = vmatprep.subr.mxu0 0.0
      %1798 = vmatpush1.msra.mxu0 0.0
      %1799 = vmatprep.subr.mxu0 0.0
      %1800 = vmatpush1.msra.mxu0 0.0
      %1801 = vmatprep.mubr.f32.mxu0 0.0
      %1802 = vmatmul.mubr.f32.gmra.mrb[0].mxu0 %v306
      %v1803 = vpop.f32.mrb[0].mxu0
      %v1804 = vadd.f32 %v1547, %v1803
      %v1805 = vpop.f32.mrb[0].mxu0
      %v1806 = vadd.f32 %v1549, %v1805
      %1807 = vmatprep.mubr.f32.mxu0 0.0
      %1808 = vmatmul.mubr.f32.gmra.mrb[0].mxu0 %v308
      %v1809 = vpop.f32.mrb[0].mxu0
      %v1810 = vadd.f32 %v1553, %v1809
      %v1811 = vpop.f32.mrb[0].mxu0
      %v1812 = vadd.f32 %v1555, %v1811
      %1813 = vmatprep.mubr.f32.mxu0 0.0
      %1814 = vmatmul.mubr.f32.gmra.mrb[0].mxu0 %v310
      %v1815 = vpop.f32.mrb[0].mxu0
      %v1816 = vadd.f32 %v1559, %v1815
      %v1817 = vpop.f32.mrb[0].mxu0
      %v1818 = vadd.f32 %v1561, %v1817
      %1819 = vmatprep.mubr.f32.mxu0 0.0
      %1820 = vmatmul.mubr.f32.gmra.mrb[0].mxu0 %v312
      %v1821 = vpop.f32.mrb[0].mxu0
      %v1822 = vadd.f32 %v1565, %v1821
      %v1823 = vpop.f32.mrb[0].mxu0
      %v1824 = vadd.f32 %v1567, %v1823
      %1825 = vmatprep.mubr.f32.mxu0 0.0
      %1826 = vmatmul.mubr.f32.gmra.mrb[0].mxu0 %v314
      %v1827 = vpop.f32.mrb[0].mxu0
      %v1828 = vadd.f32 %v1571, %v1827
      %v1829 = vpop.f32.mrb[0].mxu0
      %v1830 = vadd.f32 %v1573, %v1829
      %1831 = vmatprep.mubr.f32.mxu0 0.0
      %1832 = vmatmul.mubr.f32.gmra.mrb[0].mxu0 %v316
      %v1833 = vpop.f32.mrb[0].mxu0
      %v1834 = vadd.f32 %v1577, %v1833
      %v1835 = vpop.f32.mrb[0].mxu0
      %v1836 = vadd.f32 %v1579, %v1835
      %1837 = vmatprep.mubr.f32.mxu0 0.0
      %1838 = vmatmul.mubr.f32.gmra.mrb[0].mxu0 %v318
      %v1839 = vpop.f32.mrb[0].mxu0
      %v1840 = vadd.f32 %v1583, %v1839
      %v1841 = vpop.f32.mrb[0].mxu0
      %v1842 = vadd.f32 %v1585, %v1841
      %1843 = vmatprep.mubr.f32.mxu0 0.0
      %1844 = vmatmul.mubr.f32.gmra.mrb[0].mxu0 %v320
      %v1845 = vpop.f32.mrb[0].mxu0
      %v1846 = vadd.f32 %v1589, %v1845
      %v1847 = vpop.f32.mrb[0].mxu0
      %v1848 = vadd.f32 %v1591, %v1847
      %1849 = vmatprep.mubr.f32.mxu0 0.0
      %1850 = vmatmul.mubr.f32.gmra.mrb[0].mxu0 %v322
      %v1851 = vpop.f32.mrb[0].mxu0
      %v1852 = vadd.f32 %v1595, %v1851
      %v1853 = vpop.f32.mrb[0].mxu0
      %v1854 = vadd.f32 %v1597, %v1853
      %1855 = vmatprep.mubr.f32.mxu0 0.0
      %1856 = vmatmul.mubr.f32.gmra.mrb[0].mxu0 %v324
      %v1857 = vpop.f32.mrb[0].mxu0
      %v1858 = vadd.f32 %v1601, %v1857
      %v1859 = vpop.f32.mrb[0].mxu0
      %v1860 = vadd.f32 %v1603, %v1859
      %1861 = vmatprep.mubr.f32.mxu0 0.0
      %1862 = vmatmul.mubr.f32.gmra.mrb[0].mxu0 %v326
      %v1863 = vpop.f32.mrb[0].mxu0
      %v1864 = vadd.f32 %v1607, %v1863
      %v1865 = vpop.f32.mrb[0].mxu0
      %v1866 = vadd.f32 %v1609, %v1865
      %1867 = vmatprep.mubr.f32.mxu0 0.0
      %1868 = vmatmul.mubr.f32.gmra.mrb[0].mxu0 %v328
      %v1869 = vpop.f32.mrb[0].mxu0
      %v1870 = vadd.f32 %v1613, %v1869
      %v1871 = vpop.f32.mrb[0].mxu0
      %v1872 = vadd.f32 %v1615, %v1871
      %1873 = vmatprep.mubr.f32.mxu0 0.0
      %1874 = vmatmul.mubr.f32.gmra.mrb[0].mxu0 %v330
      %v1875 = vpop.f32.mrb[0].mxu0
      %v1876 = vadd.f32 %v1619, %v1875
      %v1877 = vpop.f32.mrb[0].mxu0
      %v1878 = vadd.f32 %v1621, %v1877
      %1879 = vmatprep.mubr.f32.mxu0 0.0
      %1880 = vmatmul.mubr.f32.gmra.mrb[0].mxu0 %v332
      %v1881 = vpop.f32.mrb[0].mxu0
      %v1882 = vadd.f32 %v1625, %v1881
      %v1883 = vpop.f32.mrb[0].mxu0
      %v1884 = vadd.f32 %v1627, %v1883
      %1885 = vmatprep.mubr.f32.mxu0 0.0
      %1886 = vmatmul.mubr.f32.gmra.mrb[0].mxu0 %v334
      %v1887 = vpop.f32.mrb[0].mxu0
      %v1888 = vadd.f32 %v1631, %v1887
      %v1889 = vpop.f32.mrb[0].mxu0
      %v1890 = vadd.f32 %v1633, %v1889
      %1891 = vmatprep.mubr.f32.mxu0 0.0
      %1892 = vmatmul.mubr.f32.gmra.mrb[0].mxu0 %v336
      %v1893 = vpop.f32.mrb[0].mxu0
      %v1894 = vadd.f32 %v1637, %v1893
      %v1895 = vpop.f32.mrb[0].mxu0
      %v1896 = vadd.f32 %v1639, %v1895
      %1897 = vmatprep.mubr.f32.mxu0 0.0
      %1898 = vmatmul.mubr.f32.gmra.mrb[0].mxu0 %v338
      %v1899 = vpop.f32.mrb[0].mxu0
      %v1900 = vadd.f32 %v1643, %v1899
      %v1901 = vpop.f32.mrb[0].mxu0
      %v1902 = vadd.f32 %v1645, %v1901
      %1903 = vmatprep.mubr.f32.mxu0 0.0
      %1904 = vmatmul.mubr.f32.gmra.mrb[0].mxu0 %v340
      %v1905 = vpop.f32.mrb[0].mxu0
      %v1906 = vadd.f32 %v1649, %v1905
      %v1907 = vpop.f32.mrb[0].mxu0
      %v1908 = vadd.f32 %v1651, %v1907
      %1909 = vmatprep.mubr.f32.mxu0 0.0
      %1910 = vmatmul.mubr.f32.gmra.mrb[0].mxu0 %v342
      %v1911 = vpop.f32.mrb[0].mxu0
      %v1912 = vadd.f32 %v1655, %v1911
      %v1913 = vpop.f32.mrb[0].mxu0
      %v1914 = vadd.f32 %v1657, %v1913
      %1915 = vmatprep.mubr.f32.mxu0 0.0
      %1916 = vmatmul.mubr.f32.gmra.mrb[0].mxu0 %v344
      %v1917 = vpop.f32.mrb[0].mxu0
      %v1918 = vadd.f32 %v1661, %v1917
      %v1919 = vpop.f32.mrb[0].mxu0
      %v1920 = vadd.f32 %v1663, %v1919
      %1921 = vmatprep.mubr.f32.mxu0 0.0
      %1922 = vmatmul.mubr.f32.gmra.mrb[0].mxu0 %v346
      %v1923 = vpop.f32.mrb[0].mxu0
      %v1924 = vadd.f32 %v1667, %v1923
      %v1925 = vpop.f32.mrb[0].mxu0
      %v1926 = vadd.f32 %v1669, %v1925
      %1927 = vmatprep.mubr.f32.mxu0 0.0
      %1928 = vmatmul.mubr.f32.gmra.mrb[0].mxu0 %v348
      %v1929 = vpop.f32.mrb[0].mxu0
      %v1930 = vadd.f32 %v1673, %v1929
      %v1931 = vpop.f32.mrb[0].mxu0
      %v1932 = vadd.f32 %v1675, %v1931
      %1933 = vmatprep.mubr.f32.mxu0 0.0
      %1934 = vmatmul.mubr.f32.gmra.mrb[0].mxu0 %v350
      %v1935 = vpop.f32.mrb[0].mxu0
      %v1936 = vadd.f32 %v1679, %v1935
      %v1937 = vpop.f32.mrb[0].mxu0
      %v1938 = vadd.f32 %v1681, %v1937
      %1939 = vmatprep.mubr.f32.mxu0 0.0
      %1940 = vmatmul.mubr.f32.gmra.mrb[0].mxu0 %v352
      %v1941 = vpop.f32.mrb[0].mxu0
      %v1942 = vadd.f32 %v1685, %v1941
      %v1943 = vpop.f32.mrb[0].mxu0
      %v1944 = vadd.f32 %v1687, %v1943
      %1945 = vmatprep.mubr.f32.mxu0 0.0
      %1946 = vmatmul.mubr.f32.gmra.mrb[0].mxu0 %v354
      %v1947 = vpop.f32.mrb[0].mxu0
      %v1948 = vadd.f32 %v1691, %v1947
      %v1949 = vpop.f32.mrb[0].mxu0
      %v1950 = vadd.f32 %v1693, %v1949
      %1951 = vmatprep.mubr.f32.mxu0 0.0
      %1952 = vmatmul.mubr.f32.gmra.mrb[0].mxu0 %v356
      %v1953 = vpop.f32.mrb[0].mxu0
      %v1954 = vadd.f32 %v1697, %v1953
      %v1955 = vpop.f32.mrb[0].mxu0
      %v1956 = vadd.f32 %v1699, %v1955
      %1957 = vmatprep.mubr.f32.mxu0 0.0
      %1958 = vmatmul.mubr.f32.gmra.mrb[0].mxu0 %v358
      %v1959 = vpop.f32.mrb[0].mxu0
      %v1960 = vadd.f32 %v1703, %v1959
      %v1961 = vpop.f32.mrb[0].mxu0
      %v1962 = vadd.f32 %v1705, %v1961
      %1963 = vmatprep.mubr.f32.mxu0 0.0
      %1964 = vmatmul.mubr.f32.gmra.mrb[0].mxu0 %v360
      %v1965 = vpop.f32.mrb[0].mxu0
      %v1966 = vadd.f32 %v1709, %v1965
      %v1967 = vpop.f32.mrb[0].mxu0
      %v1968 = vadd.f32 %v1711, %v1967
      %1969 = vmatprep.mubr.f32.mxu0 0.0
      %1970 = vmatmul.mubr.f32.gmra.mrb[0].mxu0 %v396
      %v1971 = vpop.f32.mrb[0].mxu0
      %v1972 = vadd.f32 %v1715, %v1971
      %v1973 = vpop.f32.mrb[0].mxu0
      %v1974 = vadd.f32 %v1717, %v1973
      %1975 = vmatprep.mubr.f32.mxu0 0.0
      %1976 = vmatmul.mubr.f32.gmra.mrb[0].mxu0 %v398
      %v1977 = vpop.f32.mrb[0].mxu0
      %v1978 = vadd.f32 %v1721, %v1977
      %v1979 = vpop.f32.mrb[0].mxu0
      %v1980 = vadd.f32 %v1723, %v1979
      %1981 = vmatprep.mubr.f32.mxu0 0.0
      %1982 = vmatmul.mubr.f32.gmra.mrb[0].mxu0 %v404
      %v1983 = vpop.f32.mrb[0].mxu0
      %v1984 = vadd.f32 %v1727, %v1983
      %v1985 = vpop.f32.mrb[0].mxu0
      %v1986 = vadd.f32 %v1729, %v1985
      %1987 = vmatprep.mubr.f32.mxu0 0.0
      %1988 = vmatmul.mubr.f32.gmra.mrb[0].mxu0 %v406
      %v1989 = vpop.f32.mrb[0].mxu0
      %v1990 = vadd.f32 %v1733, %v1989
      %v1991 = vpop.f32.mrb[0].mxu0
      %v1992 = vadd.f32 %v1735, %v1991
      %1993 = vdwg.mxu0
      %v1994 = vmul.f32 %v1290, 0.5
      %v1995 = vmul.f32 %v1292, 0.5
      %v1996 = vmul.f32 %v1296, 0.5
      %v1997 = vmul.f32 %v1298, 0.5
      %v1998 = vmul.f32 %v1302, 0.5
      %v1999 = vmul.f32 %v1304, 0.5
      %v2000 = vmul.f32 %v1308, 0.5
      %v2001 = vmul.f32 %v1310, 0.5
      %v2002 = vmul.f32 %v1314, 0.5
      %v2003 = vmul.f32 %v1316, 0.5
      %v2004 = vmul.f32 %v1320, 0.5
      %v2005 = vmul.f32 %v1322, 0.5
      %v2006 = vmul.f32 %v1326, 0.5
      %v2007 = vmul.f32 %v1328, 0.5
      %v2008 = vmul.f32 %v1332, 0.5
      %v2009 = vmul.f32 %v1334, 0.5
      %v2010 = vmul.f32 %v1338, 0.5
      %v2011 = vmul.f32 %v1340, 0.5
      %v2012 = vmul.f32 %v1344, 0.5
      %v2013 = vmul.f32 %v1346, 0.5
      %v2014 = vmul.f32 %v1350, 0.5
      %v2015 = vmul.f32 %v1352, 0.5
      %v2016 = vmul.f32 %v1356, 0.5
      %v2017 = vmul.f32 %v1358, 0.5
      %v2018 = vmul.f32 %v1362, 0.5
      %v2019 = vmul.f32 %v1364, 0.5
      %v2020 = vmul.f32 %v1368, 0.5
      %v2021 = vmul.f32 %v1370, 0.5
      %v2022 = vmul.f32 %v1374, 0.5
      %v2023 = vmul.f32 %v1376, 0.5
      %v2024 = vmul.f32 %v1380, 0.5
      %v2025 = vmul.f32 %v1382, 0.5
      %v2026 = vmul.f32 %v1386, 0.5
      %v2027 = vmul.f32 %v1388, 0.5
      %v2028 = vmul.f32 %v1392, 0.5
      %v2029 = vmul.f32 %v1394, 0.5
      %v2030 = vmul.f32 %v1398, 0.5
      %v2031 = vmul.f32 %v1400, 0.5
      %v2032 = vmul.f32 %v1404, 0.5
      %v2033 = vmul.f32 %v1406, 0.5
      %v2034 = vmul.f32 %v1410, 0.5
      %v2035 = vmul.f32 %v1412, 0.5
      %v2036 = vmul.f32 %v1416, 0.5
      %v2037 = vmul.f32 %v1418, 0.5
      %v2038 = vmul.f32 %v1422, 0.5
      %v2039 = vmul.f32 %v1424, 0.5
      %v2040 = vmul.f32 %v1428, 0.5
      %v2041 = vmul.f32 %v1430, 0.5
      %v2042 = vmul.f32 %v1434, 0.5
      %v2043 = vmul.f32 %v1436, 0.5
      %v2044 = vmul.f32 %v1440, 0.5
      %v2045 = vmul.f32 %v1442, 0.5
      %v2046 = vmul.f32 %v1446, 0.5
      %v2047 = vmul.f32 %v1448, 0.5
      %v2048 = vmul.f32 %v1452, 0.5
      %v2049 = vmul.f32 %v1454, 0.5
      %v2050 = vmul.f32 %v1458, 0.5
      %v2051 = vmul.f32 %v1460, 0.5
      %v2052 = vmul.f32 %v1464, 0.5
      %v2053 = vmul.f32 %v1466, 0.5
      %v2054 = vmul.f32 %v1470, 0.5
      %v2055 = vmul.f32 %v1472, 0.5
      %v2056 = vmul.f32 %v1476, 0.5
      %v2057 = vmul.f32 %v1478, 0.5
      %v2058 = vtanh.pop %v1994
      %v2059 = vtanh.pop %v1995
      %v2060 = vtanh.pop %v1996
      %v2061 = vtanh.pop %v1997
      %v2062 = vtanh.pop %v1998
      %v2063 = vtanh.pop %v1999
      %v2064 = vtanh.pop %v2000
      %v2065 = vtanh.pop %v2001
      %v2066 = vtanh.pop %v2002
      %v2067 = vtanh.pop %v2003
      %v2068 = vtanh.pop %v2004
      %v2069 = vtanh.pop %v2005
      %v2070 = vtanh.pop %v2006
      %v2071 = vtanh.pop %v2007
      %v2072 = vtanh.pop %v2008
      %v2073 = vtanh.pop %v2009
      %v2074 = vtanh.pop %v2010
      %v2075 = vtanh.pop %v2011
      %v2076 = vtanh.pop %v2012
      %v2077 = vtanh.pop %v2013
      %v2078 = vtanh.pop %v2014
      %v2079 = vtanh.pop %v2015
      %v2080 = vtanh.pop %v2016
      %v2081 = vtanh.pop %v2017
      %v2082 = vtanh.pop %v2018
      %v2083 = vtanh.pop %v2019
      %v2084 = vtanh.pop %v2020
      %v2085 = vtanh.pop %v2021
      %v2086 = vtanh.pop %v2022
      %v2087 = vtanh.pop %v2023
      %v2088 = vtanh.pop %v2024
      %v2089 = vtanh.pop %v2025
      %v2090 = vtanh.pop %v2026
      %v2091 = vtanh.pop %v2027
      %v2092 = vtanh.pop %v2028
      %v2093 = vtanh.pop %v2029
      %v2094 = vtanh.pop %v2030
      %v2095 = vtanh.pop %v2031
      %v2096 = vtanh.pop %v2032
      %v2097 = vtanh.pop %v2033
      %v2098 = vtanh.pop %v2034
      %v2099 = vtanh.pop %v2035
      %v2100 = vtanh.pop %v2036
      %v2101 = vtanh.pop %v2037
      %v2102 = vtanh.pop %v2038
      %v2103 = vtanh.pop %v2039
      %v2104 = vtanh.pop %v2040
      %v2105 = vtanh.pop %v2041
      %v2106 = vtanh.pop %v2042
      %v2107 = vtanh.pop %v2043
      %v2108 = vtanh.pop %v2044
      %v2109 = vtanh.pop %v2045
      %v2110 = vtanh.pop %v2046
      %v2111 = vtanh.pop %v2047
      %v2112 = vtanh.pop %v2048
      %v2113 = vtanh.pop %v2049
      %v2114 = vtanh.pop %v2050
      %v2115 = vtanh.pop %v2051
      %v2116 = vtanh.pop %v2052
      %v2117 = vtanh.pop %v2053
      %v2118 = vtanh.pop %v2054
      %v2119 = vtanh.pop %v2055
      %v2120 = vtanh.pop %v2056
      %v2121 = vtanh.pop %v2057
      %v2122 = vadd.f32 %v2058, 1.0
      %v2123 = vadd.f32 %v2059, 1.0
      %v2124 = vadd.f32 %v2060, 1.0
      %v2125 = vadd.f32 %v2061, 1.0
      %v2126 = vadd.f32 %v2062, 1.0
      %v2127 = vadd.f32 %v2063, 1.0
      %v2128 = vadd.f32 %v2064, 1.0
      %v2129 = vadd.f32 %v2065, 1.0
      %v2130 = vadd.f32 %v2066, 1.0
      %v2131 = vadd.f32 %v2067, 1.0
      %v2132 = vadd.f32 %v2068, 1.0
      %v2133 = vadd.f32 %v2069, 1.0
      %v2134 = vadd.f32 %v2070, 1.0
      %v2135 = vadd.f32 %v2071, 1.0
      %v2136 = vadd.f32 %v2072, 1.0
      %v2137 = vadd.f32 %v2073, 1.0
      %v2138 = vadd.f32 %v2074, 1.0
      %v2139 = vadd.f32 %v2075, 1.0
      %v2140 = vadd.f32 %v2076, 1.0
      %v2141 = vadd.f32 %v2077, 1.0
      %v2142 = vadd.f32 %v2078, 1.0
      %v2143 = vadd.f32 %v2079, 1.0
      %v2144 = vadd.f32 %v2080, 1.0
      %v2145 = vadd.f32 %v2081, 1.0
      %v2146 = vadd.f32 %v2082, 1.0
      %v2147 = vadd.f32 %v2083, 1.0
      %v2148 = vadd.f32 %v2084, 1.0
      %v2149 = vadd.f32 %v2085, 1.0
      %v2150 = vadd.f32 %v2086, 1.0
      %v2151 = vadd.f32 %v2087, 1.0
      %v2152 = vadd.f32 %v2088, 1.0
      %v2153 = vadd.f32 %v2089, 1.0
      %v2154 = vadd.f32 %v2090, 1.0
      %v2155 = vadd.f32 %v2091, 1.0
      %v2156 = vadd.f32 %v2092, 1.0
      %v2157 = vadd.f32 %v2093, 1.0
      %v2158 = vadd.f32 %v2094, 1.0
      %v2159 = vadd.f32 %v2095, 1.0
      %v2160 = vadd.f32 %v2096, 1.0
      %v2161 = vadd.f32 %v2097, 1.0
      %v2162 = vadd.f32 %v2098, 1.0
      %v2163 = vadd.f32 %v2099, 1.0
      %v2164 = vadd.f32 %v2100, 1.0
      %v2165 = vadd.f32 %v2101, 1.0
      %v2166 = vadd.f32 %v2102, 1.0
      %v2167 = vadd.f32 %v2103, 1.0
      %v2168 = vadd.f32 %v2104, 1.0
      %v2169 = vadd.f32 %v2105, 1.0
      %v2170 = vadd.f32 %v2106, 1.0
      %v2171 = vadd.f32 %v2107, 1.0
      %v2172 = vadd.f32 %v2108, 1.0
      %v2173 = vadd.f32 %v2109, 1.0
      %v2174 = vadd.f32 %v2110, 1.0
      %v2175 = vadd.f32 %v2111, 1.0
      %v2176 = vadd.f32 %v2112, 1.0
      %v2177 = vadd.f32 %v2113, 1.0
      %v2178 = vadd.f32 %v2114, 1.0
      %v2179 = vadd.f32 %v2115, 1.0
      %v2180 = vadd.f32 %v2116, 1.0
      %v2181 = vadd.f32 %v2117, 1.0
      %v2182 = vadd.f32 %v2118, 1.0
      %v2183 = vadd.f32 %v2119, 1.0
      %v2184 = vadd.f32 %v2120, 1.0
      %v2185 = vadd.f32 %v2121, 1.0
      %v2186 = vmul.f32 %v1994, %v2122
      %v2187 = vmul.f32 %v1995, %v2123
      %v2188 = vmul.f32 %v1996, %v2124
      %v2189 = vmul.f32 %v1997, %v2125
      %v2190 = vmul.f32 %v1998, %v2126
      %v2191 = vmul.f32 %v1999, %v2127
      %v2192 = vmul.f32 %v2000, %v2128
      %v2193 = vmul.f32 %v2001, %v2129
      %v2194 = vmul.f32 %v2002, %v2130
      %v2195 = vmul.f32 %v2003, %v2131
      %v2196 = vmul.f32 %v2004, %v2132
      %v2197 = vmul.f32 %v2005, %v2133
      %v2198 = vmul.f32 %v2006, %v2134
      %v2199 = vmul.f32 %v2007, %v2135
      %v2200 = vmul.f32 %v2008, %v2136
      %v2201 = vmul.f32 %v2009, %v2137
      %v2202 = vmul.f32 %v2010, %v2138
      %v2203 = vmul.f32 %v2011, %v2139
      %v2204 = vmul.f32 %v2012, %v2140
      %v2205 = vmul.f32 %v2013, %v2141
      %v2206 = vmul.f32 %v2014, %v2142
      %v2207 = vmul.f32 %v2015, %v2143
      %v2208 = vmul.f32 %v2016, %v2144
      %v2209 = vmul.f32 %v2017, %v2145
      %v2210 = vmul.f32 %v2018, %v2146
      %v2211 = vmul.f32 %v2019, %v2147
      %v2212 = vmul.f32 %v2020, %v2148
      %v2213 = vmul.f32 %v2021, %v2149
      %v2214 = vmul.f32 %v2022, %v2150
      %v2215 = vmul.f32 %v2023, %v2151
      %v2216 = vmul.f32 %v2024, %v2152
      %v2217 = vmul.f32 %v2025, %v2153
      %v2218 = vmul.f32 %v2026, %v2154
      %v2219 = vmul.f32 %v2027, %v2155
      %v2220 = vmul.f32 %v2028, %v2156
      %v2221 = vmul.f32 %v2029, %v2157
      %v2222 = vmul.f32 %v2030, %v2158
      %v2223 = vmul.f32 %v2031, %v2159
      %v2224 = vmul.f32 %v2032, %v2160
      %v2225 = vmul.f32 %v2033, %v2161
      %v2226 = vmul.f32 %v2034, %v2162
      %v2227 = vmul.f32 %v2035, %v2163
      %v2228 = vmul.f32 %v2036, %v2164
      %v2229 = vmul.f32 %v2037, %v2165
      %v2230 = vmul.f32 %v2038, %v2166
      %v2231 = vmul.f32 %v2039, %v2167
      %v2232 = vmul.f32 %v2040, %v2168
      %v2233 = vmul.f32 %v2041, %v2169
      %v2234 = vmul.f32 %v2042, %v2170
      %v2235 = vmul.f32 %v2043, %v2171
      %v2236 = vmul.f32 %v2044, %v2172
      %v2237 = vmul.f32 %v2045, %v2173
      %v2238 = vmul.f32 %v2046, %v2174
      %v2239 = vmul.f32 %v2047, %v2175
      %v2240 = vmul.f32 %v2048, %v2176
      %v2241 = vmul.f32 %v2049, %v2177
      %v2242 = vmul.f32 %v2050, %v2178
      %v2243 = vmul.f32 %v2051, %v2179
      %v2244 = vmul.f32 %v2052, %v2180
      %v2245 = vmul.f32 %v2053, %v2181
      %v2246 = vmul.f32 %v2054, %v2182
      %v2247 = vmul.f32 %v2055, %v2183
      %v2248 = vmul.f32 %v2056, %v2184
      %v2249 = vmul.f32 %v2057, %v2185
      %v2250 = vmul.f32 %v1804, 0.5
      %v2251 = vmul.f32 %v1806, 0.5
      %v2252 = vmul.f32 %v1810, 0.5
      %v2253 = vmul.f32 %v1812, 0.5
      %v2254 = vmul.f32 %v1816, 0.5
      %v2255 = vmul.f32 %v1818, 0.5
      %v2256 = vmul.f32 %v1822, 0.5
      %v2257 = vmul.f32 %v1824, 0.5
      %v2258 = vmul.f32 %v1828, 0.5
      %v2259 = vmul.f32 %v1830, 0.5
      %v2260 = vmul.f32 %v1834, 0.5
      %v2261 = vmul.f32 %v1836, 0.5
      %v2262 = vmul.f32 %v1840, 0.5
      %v2263 = vmul.f32 %v1842, 0.5
      %v2264 = vmul.f32 %v1846, 0.5
      %v2265 = vmul.f32 %v1848, 0.5
      %v2266 = vmul.f32 %v1852, 0.5
      %v2267 = vmul.f32 %v1854, 0.5
      %v2268 = vmul.f32 %v1858, 0.5
      %v2269 = vmul.f32 %v1860, 0.5
      %v2270 = vmul.f32 %v1864, 0.5
      %v2271 = vmul.f32 %v1866, 0.5
      %v2272 = vmul.f32 %v1870, 0.5
      %v2273 = vmul.f32 %v1872, 0.5
      %v2274 = vmul.f32 %v1876, 0.5
      %v2275 = vmul.f32 %v1878, 0.5
      %v2276 = vmul.f32 %v1882, 0.5
      %v2277 = vmul.f32 %v1884, 0.5
      %v2278 = vmul.f32 %v1888, 0.5
      %v2279 = vmul.f32 %v1890, 0.5
      %v2280 = vmul.f32 %v1894, 0.5
      %v2281 = vmul.f32 %v1896, 0.5
      %v2282 = vmul.f32 %v1900, 0.5
      %v2283 = vmul.f32 %v1902, 0.5
      %v2284 = vmul.f32 %v1906, 0.5
      %v2285 = vmul.f32 %v1908, 0.5
      %v2286 = vmul.f32 %v1912, 0.5
      %v2287 = vmul.f32 %v1914, 0.5
      %v2288 = vmul.f32 %v1918, 0.5
      %v2289 = vmul.f32 %v1920, 0.5
      %v2290 = vmul.f32 %v1924, 0.5
      %v2291 = vmul.f32 %v1926, 0.5
      %v2292 = vmul.f32 %v1930, 0.5
      %v2293 = vmul.f32 %v1932, 0.5
      %v2294 = vmul.f32 %v1936, 0.5
      %v2295 = vmul.f32 %v1938, 0.5
      %v2296 = vmul.f32 %v1942, 0.5
      %v2297 = vmul.f32 %v1944, 0.5
      %v2298 = vmul.f32 %v1948, 0.5
      %v2299 = vmul.f32 %v1950, 0.5
      %v2300 = vmul.f32 %v1954, 0.5
      %v2301 = vmul.f32 %v1956, 0.5
      %v2302 = vmul.f32 %v1960, 0.5
      %v2303 = vmul.f32 %v1962, 0.5
      %v2304 = vmul.f32 %v1966, 0.5
      %v2305 = vmul.f32 %v1968, 0.5
      %v2306 = vmul.f32 %v1972, 0.5
      %v2307 = vmul.f32 %v1974, 0.5
      %v2308 = vmul.f32 %v1978, 0.5
      %v2309 = vmul.f32 %v1980, 0.5
      %v2310 = vmul.f32 %v1984, 0.5
      %v2311 = vmul.f32 %v1986, 0.5
      %v2312 = vmul.f32 %v1990, 0.5
      %v2313 = vmul.f32 %v1992, 0.5
      %v2314 = vtanh.pop %v2250
      %v2315 = vtanh.pop %v2251
      %v2316 = vtanh.pop %v2252
      %v2317 = vtanh.pop %v2253
      %v2318 = vtanh.pop %v2254
      %v2319 = vtanh.pop %v2255
      %v2320 = vtanh.pop %v2256
      %v2321 = vtanh.pop %v2257
      %v2322 = vtanh.pop %v2258
      %v2323 = vtanh.pop %v2259
      %v2324 = vtanh.pop %v2260
      %v2325 = vtanh.pop %v2261
      %v2326 = vtanh.pop %v2262
      %v2327 = vtanh.pop %v2263
      %v2328 = vtanh.pop %v2264
      %v2329 = vtanh.pop %v2265
      %v2330 = vtanh.pop %v2266
      %v2331 = vtanh.pop %v2267
      %v2332 = vtanh.pop %v2268
      %v2333 = vtanh.pop %v2269
      %v2334 = vtanh.pop %v2270
      %v2335 = vtanh.pop %v2271
      %v2336 = vtanh.pop %v2272
      %v2337 = vtanh.pop %v2273
      %v2338 = vtanh.pop %v2274
      %v2339 = vtanh.pop %v2275
      %v2340 = vtanh.pop %v2276
      %v2341 = vtanh.pop %v2277
      %v2342 = vtanh.pop %v2278
      %v2343 = vtanh.pop %v2279
      %v2344 = vtanh.pop %v2280
      %v2345 = vtanh.pop %v2281
      %v2346 = vtanh.pop %v2282
      %v2347 = vtanh.pop %v2283
      %v2348 = vtanh.pop %v2284
      %v2349 = vtanh.pop %v2285
      %v2350 = vtanh.pop %v2286
      %v2351 = vtanh.pop %v2287
      %v2352 = vtanh.pop %v2288
      %v2353 = vtanh.pop %v2289
      %v2354 = vtanh.pop %v2290
      %v2355 = vtanh.pop %v2291
      %v2356 = vtanh.pop %v2292
      %v2357 = vtanh.pop %v2293
      %v2358 = vtanh.pop %v2294
      %v2359 = vtanh.pop %v2295
      %v2360 = vtanh.pop %v2296
      %v2361 = vtanh.pop %v2297
      %v2362 = vtanh.pop %v2298
      %v2363 = vtanh.pop %v2299
      %v2364 = vtanh.pop %v2300
      %v2365 = vtanh.pop %v2301
      %v2366 = vtanh.pop %v2302
      %v2367 = vtanh.pop %v2303
      %v2368 = vtanh.pop %v2304
      %v2369 = vtanh.pop %v2305
      %v2370 = vtanh.pop %v2306
      %v2371 = vtanh.pop %v2307
      %v2372 = vtanh.pop %v2308
      %v2373 = vtanh.pop %v2309
      %v2374 = vtanh.pop %v2310
      %v2375 = vtanh.pop %v2311
      %v2376 = vtanh.pop %v2312
      %v2377 = vtanh.pop %v2313
      %v2378 = vadd.f32 %v2314, 1.0
      %v2379 = vadd.f32 %v2315, 1.0
      %v2380 = vadd.f32 %v2316, 1.0
      %v2381 = vadd.f32 %v2317, 1.0
      %v2382 = vadd.f32 %v2318, 1.0
      %v2383 = vadd.f32 %v2319, 1.0
      %v2384 = vadd.f32 %v2320, 1.0
      %v2385 = vadd.f32 %v2321, 1.0
      %v2386 = vadd.f32 %v2322, 1.0
      %v2387 = vadd.f32 %v2323, 1.0
      %v2388 = vadd.f32 %v2324, 1.0
      %v2389 = vadd.f32 %v2325, 1.0
      %v2390 = vadd.f32 %v2326, 1.0
      %v2391 = vadd.f32 %v2327, 1.0
      %v2392 = vadd.f32 %v2328, 1.0
      %v2393 = vadd.f32 %v2329, 1.0
      %v2394 = vadd.f32 %v2330, 1.0
      %v2395 = vadd.f32 %v2331, 1.0
      %v2396 = vadd.f32 %v2332, 1.0
      %v2397 = vadd.f32 %v2333, 1.0
      %v2398 = vadd.f32 %v2334, 1.0
      %v2399 = vadd.f32 %v2335, 1.0
      %v2400 = vadd.f32 %v2336, 1.0
      %v2401 = vadd.f32 %v2337, 1.0
      %v2402 = vadd.f32 %v2338, 1.0
      %v2403 = vadd.f32 %v2339, 1.0
      %v2404 = vadd.f32 %v2340, 1.0
      %v2405 = vadd.f32 %v2341, 1.0
      %v2406 = vadd.f32 %v2342, 1.0
      %v2407 = vadd.f32 %v2343, 1.0
      %v2408 = vadd.f32 %v2344, 1.0
      %v2409 = vadd.f32 %v2345, 1.0
      %v2410 = vadd.f32 %v2346, 1.0
      %v2411 = vadd.f32 %v2347, 1.0
      %v2412 = vadd.f32 %v2348, 1.0
      %v2413 = vadd.f32 %v2349, 1.0
      %v2414 = vadd.f32 %v2350, 1.0
      %v2415 = vadd.f32 %v2351, 1.0
      %v2416 = vadd.f32 %v2352, 1.0
      %v2417 = vadd.f32 %v2353, 1.0
      %v2418 = vadd.f32 %v2354, 1.0
      %v2419 = vadd.f32 %v2355, 1.0
      %v2420 = vadd.f32 %v2356, 1.0
      %v2421 = vadd.f32 %v2357, 1.0
      %v2422 = vadd.f32 %v2358, 1.0
      %v2423 = vadd.f32 %v2359, 1.0
      %v2424 = vadd.f32 %v2360, 1.0
      %v2425 = vadd.f32 %v2361, 1.0
      %v2426 = vadd.f32 %v2362, 1.0
      %v2427 = vadd.f32 %v2363, 1.0
      %v2428 = vadd.f32 %v2364, 1.0
      %v2429 = vadd.f32 %v2365, 1.0
      %v2430 = vadd.f32 %v2366, 1.0
      %v2431 = vadd.f32 %v2367, 1.0
      %v2432 = vadd.f32 %v2368, 1.0
      %v2433 = vadd.f32 %v2369, 1.0
      %v2434 = vadd.f32 %v2370, 1.0
      %v2435 = vadd.f32 %v2371, 1.0
      %v2436 = vadd.f32 %v2372, 1.0
      %v2437 = vadd.f32 %v2373, 1.0
      %v2438 = vadd.f32 %v2374, 1.0
      %v2439 = vadd.f32 %v2375, 1.0
      %v2440 = vadd.f32 %v2376, 1.0
      %v2441 = vadd.f32 %v2377, 1.0
      %v2442 = vmul.f32 %v2250, %v2378
      %v2443 = vmul.f32 %v2251, %v2379
      %v2444 = vmul.f32 %v2252, %v2380
      %v2445 = vmul.f32 %v2253, %v2381
      %v2446 = vmul.f32 %v2254, %v2382
      %v2447 = vmul.f32 %v2255, %v2383
      %v2448 = vmul.f32 %v2256, %v2384
      %v2449 = vmul.f32 %v2257, %v2385
      %v2450 = vmul.f32 %v2258, %v2386
      %v2451 = vmul.f32 %v2259, %v2387
      %v2452 = vmul.f32 %v2260, %v2388
      %v2453 = vmul.f32 %v2261, %v2389
      %v2454 = vmul.f32 %v2262, %v2390
      %v2455 = vmul.f32 %v2263, %v2391
      %v2456 = vmul.f32 %v2264, %v2392
      %v2457 = vmul.f32 %v2265, %v2393
      %v2458 = vmul.f32 %v2266, %v2394
      %v2459 = vmul.f32 %v2267, %v2395
      %v2460 = vmul.f32 %v2268, %v2396
      %v2461 = vmul.f32 %v2269, %v2397
      %v2462 = vmul.f32 %v2270, %v2398
      %v2463 = vmul.f32 %v2271, %v2399
      %v2464 = vmul.f32 %v2272, %v2400
      %v2465 = vmul.f32 %v2273, %v2401
      %v2466 = vmul.f32 %v2274, %v2402
      %v2467 = vmul.f32 %v2275, %v2403
      %v2468 = vmul.f32 %v2276, %v2404
      %v2469 = vmul.f32 %v2277, %v2405
      %v2470 = vmul.f32 %v2278, %v2406
      %v2471 = vmul.f32 %v2279, %v2407
      %v2472 = vmul.f32 %v2280, %v2408
      %v2473 = vmul.f32 %v2281, %v2409
      %v2474 = vmul.f32 %v2282, %v2410
      %v2475 = vmul.f32 %v2283, %v2411
      %v2476 = vmul.f32 %v2284, %v2412
      %v2477 = vmul.f32 %v2285, %v2413
      %v2478 = vmul.f32 %v2286, %v2414
      %v2479 = vmul.f32 %v2287, %v2415
      %v2480 = vmul.f32 %v2288, %v2416
      %v2481 = vmul.f32 %v2289, %v2417
      %v2482 = vmul.f32 %v2290, %v2418
      %v2483 = vmul.f32 %v2291, %v2419
      %v2484 = vmul.f32 %v2292, %v2420
      %v2485 = vmul.f32 %v2293, %v2421
      %v2486 = vmul.f32 %v2294, %v2422
      %v2487 = vmul.f32 %v2295, %v2423
      %v2488 = vmul.f32 %v2296, %v2424
      %v2489 = vmul.f32 %v2297, %v2425
      %v2490 = vmul.f32 %v2298, %v2426
      %v2491 = vmul.f32 %v2299, %v2427
      %v2492 = vmul.f32 %v2300, %v2428
      %v2493 = vmul.f32 %v2301, %v2429
      %v2494 = vmul.f32 %v2302, %v2430
      %v2495 = vmul.f32 %v2303, %v2431
      %v2496 = vmul.f32 %v2304, %v2432
      %v2497 = vmul.f32 %v2305, %v2433
      %v2498 = vmul.f32 %v2306, %v2434
      %v2499 = vmul.f32 %v2307, %v2435
      %v2500 = vmul.f32 %v2308, %v2436
      %v2501 = vmul.f32 %v2309, %v2437
      %v2502 = vmul.f32 %v2310, %v2438
      %v2503 = vmul.f32 %v2311, %v2439
      %v2504 = vmul.f32 %v2312, %v2440
      %v2505 = vmul.f32 %v2313, %v2441
      %v2506 = vmax.f32 %v2186, 0.0
      %v2507 = vmax.f32 %v2187, 0.0
      %v2508 = vmax.f32 %v2188, 0.0
      %v2509 = vmax.f32 %v2189, 0.0
      %v2510 = vmax.f32 %v2190, 0.0
      %v2511 = vmax.f32 %v2191, 0.0
      %v2512 = vmax.f32 %v2192, 0.0
      %v2513 = vmax.f32 %v2193, 0.0
      %v2514 = vmax.f32 %v2194, 0.0
      %v2515 = vmax.f32 %v2195, 0.0
      %v2516 = vmax.f32 %v2196, 0.0
      %v2517 = vmax.f32 %v2197, 0.0
      %v2518 = vmax.f32 %v2198, 0.0
      %v2519 = vmax.f32 %v2199, 0.0
      %v2520 = vmax.f32 %v2200, 0.0
      %v2521 = vmax.f32 %v2201, 0.0
      %v2522 = vmax.f32 %v2202, 0.0
      %v2523 = vmax.f32 %v2203, 0.0
      %v2524 = vmax.f32 %v2204, 0.0
      %v2525 = vmax.f32 %v2205, 0.0
      %v2526 = vmax.f32 %v2206, 0.0
      %v2527 = vmax.f32 %v2207, 0.0
      %v2528 = vmax.f32 %v2208, 0.0
      %v2529 = vmax.f32 %v2209, 0.0
      %v2530 = vmax.f32 %v2210, 0.0
      %v2531 = vmax.f32 %v2211, 0.0
      %v2532 = vmax.f32 %v2212, 0.0
      %v2533 = vmax.f32 %v2213, 0.0
      %v2534 = vmax.f32 %v2214, 0.0
      %v2535 = vmax.f32 %v2215, 0.0
      %v2536 = vmax.f32 %v2216, 0.0
      %v2537 = vmax.f32 %v2217, 0.0
      %v2538 = vmax.f32 %v2218, 0.0
      %v2539 = vmax.f32 %v2219, 0.0
      %v2540 = vmax.f32 %v2220, 0.0
      %v2541 = vmax.f32 %v2221, 0.0
      %v2542 = vmax.f32 %v2222, 0.0
      %v2543 = vmax.f32 %v2223, 0.0
      %v2544 = vmax.f32 %v2224, 0.0
      %v2545 = vmax.f32 %v2225, 0.0
      %v2546 = vmax.f32 %v2226, 0.0
      %v2547 = vmax.f32 %v2227, 0.0
      %v2548 = vmax.f32 %v2228, 0.0
      %v2549 = vmax.f32 %v2229, 0.0
      %v2550 = vmax.f32 %v2230, 0.0
      %v2551 = vmax.f32 %v2231, 0.0
      %v2552 = vmax.f32 %v2232, 0.0
      %v2553 = vmax.f32 %v2233, 0.0
      %v2554 = vmax.f32 %v2234, 0.0
      %v2555 = vmax.f32 %v2235, 0.0
      %v2556 = vmax.f32 %v2236, 0.0
      %v2557 = vmax.f32 %v2237, 0.0
      %v2558 = vmax.f32 %v2238, 0.0
      %v2559 = vmax.f32 %v2239, 0.0
      %v2560 = vmax.f32 %v2240, 0.0
      %v2561 = vmax.f32 %v2241, 0.0
      %v2562 = vmax.f32 %v2242, 0.0
      %v2563 = vmax.f32 %v2243, 0.0
      %v2564 = vmax.f32 %v2244, 0.0
      %v2565 = vmax.f32 %v2245, 0.0
      %v2566 = vmax.f32 %v2246, 0.0
      %v2567 = vmax.f32 %v2247, 0.0
      %v2568 = vmax.f32 %v2248, 0.0
      %v2569 = vmax.f32 %v2249, 0.0
      %2570 = vst [vmem:[%s221] sm:$0xff] %v2506
      %2571 = vst [vmem:[%s221 + $0x8] sm:$0xff] %v2507
      %2572 = vst [vmem:[%s221 + $0x20] sm:$0xff] %v2508
      %2573 = vst [vmem:[%s221 + $0x28] sm:$0xff] %v2509
      %2574 = vst [vmem:[%s221 + $0x40] sm:$0xff] %v2510
      %2575 = vst [vmem:[%s221 + $0x48] sm:$0xff] %v2511
      %2576 = vst [vmem:[%s221 + $0x60] sm:$0xff] %v2512
      %2577 = vst [vmem:[%s221 + $0x68] sm:$0xff] %v2513
      %2578 = vst [vmem:[%s221 + $0x80] sm:$0xff] %v2514
      %2579 = vst [vmem:[%s221 + $0x88] sm:$0xff] %v2515
      %2580 = vst [vmem:[%s221 + $0xa0] sm:$0xff] %v2516
      %2581 = vst [vmem:[%s221 + $0xa8] sm:$0xff] %v2517
      %2582 = vst [vmem:[%s221 + $0xc0] sm:$0xff] %v2518
      %2583 = vst [vmem:[%s221 + $0xc8] sm:$0xff] %v2519
      %2584 = vst [vmem:[%s221 + $0xe0] sm:$0xff] %v2520
      %2585 = vst [vmem:[%s221 + $0xe8] sm:$0xff] %v2521
      %2586 = vst [vmem:[%s221 + $0x100] sm:$0xff] %v2522
      %2587 = vst [vmem:[%s221 + $0x108] sm:$0xff] %v2523
      %2588 = vst [vmem:[%s221 + $0x120] sm:$0xff] %v2524
      %2589 = vst [vmem:[%s221 + $0x128] sm:$0xff] %v2525
      %2590 = vst [vmem:[%s221 + $0x140] sm:$0xff] %v2526
      %2591 = vst [vmem:[%s221 + $0x148] sm:$0xff] %v2527
      %2592 = vst [vmem:[%s221 + $0x160] sm:$0xff] %v2528
      %2593 = vst [vmem:[%s221 + $0x168] sm:$0xff] %v2529
      %2594 = vst [vmem:[%s221 + $0x180] sm:$0xff] %v2530
      %2595 = vst [vmem:[%s221 + $0x188] sm:$0xff] %v2531
      %2596 = vst [vmem:[%s221 + $0x1a0] sm:$0xff] %v2532
      %2597 = vst [vmem:[%s221 + $0x1a8] sm:$0xff] %v2533
      %2598 = vst [vmem:[%s221 + $0x1c0] sm:$0xff] %v2534
      %2599 = vst [vmem:[%s221 + $0x1c8] sm:$0xff] %v2535
      %2600 = vst [vmem:[%s221 + $0x1e0] sm:$0xff] %v2536
      %2601 = vst [vmem:[%s221 + $0x1e8] sm:$0xff] %v2537
      %2602 = vst [vmem:[%s221 + $0x200] sm:$0xff] %v2538
      %2603 = vst [vmem:[%s221 + $0x208] sm:$0xff] %v2539
      %2604 = vst [vmem:[%s221 + $0x220] sm:$0xff] %v2540
      %2605 = vst [vmem:[%s221 + $0x228] sm:$0xff] %v2541
      %2606 = vst [vmem:[%s221 + $0x240] sm:$0xff] %v2542
      %2607 = vst [vmem:[%s221 + $0x248] sm:$0xff] %v2543
      %2608 = vst [vmem:[%s221 + $0x260] sm:$0xff] %v2544
      %2609 = vst [vmem:[%s221 + $0x268] sm:$0xff] %v2545
      %2610 = vst [vmem:[%s221 + $0x280] sm:$0xff] %v2546
      %2611 = vst [vmem:[%s221 + $0x288] sm:$0xff] %v2547
      %2612 = vst [vmem:[%s221 + $0x2a0] sm:$0xff] %v2548
      %2613 = vst [vmem:[%s221 + $0x2a8] sm:$0xff] %v2549
      %2614 = vst [vmem:[%s221 + $0x2c0] sm:$0xff] %v2550
      %2615 = vst [vmem:[%s221 + $0x2c8] sm:$0xff] %v2551
      %2616 = vst [vmem:[%s221 + $0x2e0] sm:$0xff] %v2552
      %2617 = vst [vmem:[%s221 + $0x2e8] sm:$0xff] %v2553
      %2618 = vst [vmem:[%s221 + $0x300] sm:$0xff] %v2554
      %2619 = vst [vmem:[%s221 + $0x308] sm:$0xff] %v2555
      %2620 = vst [vmem:[%s221 + $0x320] sm:$0xff] %v2556
      %2621 = vst [vmem:[%s221 + $0x328] sm:$0xff] %v2557
      %2622 = vst [vmem:[%s221 + $0x340] sm:$0xff] %v2558
      %2623 = vst [vmem:[%s221 + $0x348] sm:$0xff] %v2559
      %2624 = vst [vmem:[%s221 + $0x360] sm:$0xff] %v2560
      %2625 = vst [vmem:[%s221 + $0x368] sm:$0xff] %v2561
      %2626 = vst [vmem:[%s221 + $0x380] sm:$0xff] %v2562
      %2627 = vst [vmem:[%s221 + $0x388] sm:$0xff] %v2563
      %2628 = vst [vmem:[%s221 + $0x3a0] sm:$0xff] %v2564
      %2629 = vst [vmem:[%s221 + $0x3a8] sm:$0xff] %v2565
      %2630 = vst [vmem:[%s221 + $0x3c0] sm:$0xff] %v2566
      %2631 = vst [vmem:[%s221 + $0x3c8] sm:$0xff] %v2567
      %2632 = vst [vmem:[%s221 + $0x3e0] sm:$0xff] %v2568
      %2633 = vst [vmem:[%s221 + $0x3e8] sm:$0xff] %v2569
      %v2634 = vmax.f32 %v2442, 0.0
      %v2635 = vmax.f32 %v2443, 0.0
      %v2636 = vmax.f32 %v2444, 0.0
      %v2637 = vmax.f32 %v2445, 0.0
      %v2638 = vmax.f32 %v2446, 0.0
      %v2639 = vmax.f32 %v2447, 0.0
      %v2640 = vmax.f32 %v2448, 0.0
      %v2641 = vmax.f32 %v2449, 0.0
      %v2642 = vmax.f32 %v2450, 0.0
      %v2643 = vmax.f32 %v2451, 0.0
      %v2644 = vmax.f32 %v2452, 0.0
      %v2645 = vmax.f32 %v2453, 0.0
      %v2646 = vmax.f32 %v2454, 0.0
      %v2647 = vmax.f32 %v2455, 0.0
      %v2648 = vmax.f32 %v2456, 0.0
      %v2649 = vmax.f32 %v2457, 0.0
      %v2650 = vmax.f32 %v2458, 0.0
      %v2651 = vmax.f32 %v2459, 0.0
      %v2652 = vmax.f32 %v2460, 0.0
      %v2653 = vmax.f32 %v2461, 0.0
      %v2654 = vmax.f32 %v2462, 0.0
      %v2655 = vmax.f32 %v2463, 0.0
      %v2656 = vmax.f32 %v2464, 0.0
      %v2657 = vmax.f32 %v2465, 0.0
      %v2658 = vmax.f32 %v2466, 0.0
      %v2659 = vmax.f32 %v2467, 0.0
      %v2660 = vmax.f32 %v2468, 0.0
      %v2661 = vmax.f32 %v2469, 0.0
      %v2662 = vmax.f32 %v2470, 0.0
      %v2663 = vmax.f32 %v2471, 0.0
      %v2664 = vmax.f32 %v2472, 0.0
      %v2665 = vmax.f32 %v2473, 0.0
      %v2666 = vmax.f32 %v2474, 0.0
      %v2667 = vmax.f32 %v2475, 0.0
      %v2668 = vmax.f32 %v2476, 0.0
      %v2669 = vmax.f32 %v2477, 0.0
      %v2670 = vmax.f32 %v2478, 0.0
      %v2671 = vmax.f32 %v2479, 0.0
      %v2672 = vmax.f32 %v2480, 0.0
      %v2673 = vmax.f32 %v2481, 0.0
      %v2674 = vmax.f32 %v2482, 0.0
      %v2675 = vmax.f32 %v2483, 0.0
      %v2676 = vmax.f32 %v2484, 0.0
      %v2677 = vmax.f32 %v2485, 0.0
      %v2678 = vmax.f32 %v2486, 0.0
      %v2679 = vmax.f32 %v2487, 0.0
      %v2680 = vmax.f32 %v2488, 0.0
      %v2681 = vmax.f32 %v2489, 0.0
      %v2682 = vmax.f32 %v2490, 0.0
      %v2683 = vmax.f32 %v2491, 0.0
      %v2684 = vmax.f32 %v2492, 0.0
      %v2685 = vmax.f32 %v2493, 0.0
      %v2686 = vmax.f32 %v2494, 0.0
      %v2687 = vmax.f32 %v2495, 0.0
      %v2688 = vmax.f32 %v2496, 0.0
      %v2689 = vmax.f32 %v2497, 0.0
      %v2690 = vmax.f32 %v2498, 0.0
      %v2691 = vmax.f32 %v2499, 0.0
      %v2692 = vmax.f32 %v2500, 0.0
      %v2693 = vmax.f32 %v2501, 0.0
      %v2694 = vmax.f32 %v2502, 0.0
      %v2695 = vmax.f32 %v2503, 0.0
      %v2696 = vmax.f32 %v2504, 0.0
      %v2697 = vmax.f32 %v2505, 0.0
      %2698 = vst [vmem:[%s221 + $0x10] sm:$0xff] %v2634
      %2699 = vst [vmem:[%s221 + $0x18] sm:$0xff] %v2635
      %2700 = vst [vmem:[%s221 + $0x30] sm:$0xff] %v2636
      %2701 = vst [vmem:[%s221 + $0x38] sm:$0xff] %v2637
      %2702 = vst [vmem:[%s221 + $0x50] sm:$0xff] %v2638
      %2703 = vst [vmem:[%s221 + $0x58] sm:$0xff] %v2639
      %2704 = vst [vmem:[%s221 + $0x70] sm:$0xff] %v2640
      %2705 = vst [vmem:[%s221 + $0x78] sm:$0xff] %v2641
      %2706 = vst [vmem:[%s221 + $0x90] sm:$0xff] %v2642
      %2707 = vst [vmem:[%s221 + $0x98] sm:$0xff] %v2643
      %2708 = vst [vmem:[%s221 + $0xb0] sm:$0xff] %v2644
      %2709 = vst [vmem:[%s221 + $0xb8] sm:$0xff] %v2645
      %2710 = vst [vmem:[%s221 + $0xd0] sm:$0xff] %v2646
      %2711 = vst [vmem:[%s221 + $0xd8] sm:$0xff] %v2647
      %2712 = vst [vmem:[%s221 + $0xf0] sm:$0xff] %v2648
      %2713 = vst [vmem:[%s221 + $0xf8] sm:$0xff] %v2649
      %2714 = vst [vmem:[%s221 + $0x110] sm:$0xff] %v2650
      %2715 = vst [vmem:[%s221 + $0x118] sm:$0xff] %v2651
      %2716 = vst [vmem:[%s221 + $0x130] sm:$0xff] %v2652
      %2717 = vst [vmem:[%s221 + $0x138] sm:$0xff] %v2653
      %2718 = vst [vmem:[%s221 + $0x150] sm:$0xff] %v2654
      %2719 = vst [vmem:[%s221 + $0x158] sm:$0xff] %v2655
      %2720 = vst [vmem:[%s221 + $0x170] sm:$0xff] %v2656
      %2721 = vst [vmem:[%s221 + $0x178] sm:$0xff] %v2657
      %2722 = vst [vmem:[%s221 + $0x190] sm:$0xff] %v2658
      %2723 = vst [vmem:[%s221 + $0x198] sm:$0xff] %v2659
      %2724 = vst [vmem:[%s221 + $0x1b0] sm:$0xff] %v2660
      %2725 = vst [vmem:[%s221 + $0x1b8] sm:$0xff] %v2661
      %2726 = vst [vmem:[%s221 + $0x1d0] sm:$0xff] %v2662
      %2727 = vst [vmem:[%s221 + $0x1d8] sm:$0xff] %v2663
      %2728 = vst [vmem:[%s221 + $0x1f0] sm:$0xff] %v2664
      %2729 = vst [vmem:[%s221 + $0x1f8] sm:$0xff] %v2665
      %2730 = vst [vmem:[%s221 + $0x210] sm:$0xff] %v2666
      %2731 = vst [vmem:[%s221 + $0x218] sm:$0xff] %v2667
      %2732 = vst [vmem:[%s221 + $0x230] sm:$0xff] %v2668
      %2733 = vst [vmem:[%s221 + $0x238] sm:$0xff] %v2669
      %2734 = vst [vmem:[%s221 + $0x250] sm:$0xff] %v2670
      %2735 = vst [vmem:[%s221 + $0x258] sm:$0xff] %v2671
      %2736 = vst [vmem:[%s221 + $0x270] sm:$0xff] %v2672
      %2737 = vst [vmem:[%s221 + $0x278] sm:$0xff] %v2673
      %2738 = vst [vmem:[%s221 + $0x290] sm:$0xff] %v2674
      %2739 = vst [vmem:[%s221 + $0x298] sm:$0xff] %v2675
      %2740 = vst [vmem:[%s221 + $0x2b0] sm:$0xff] %v2676
      %2741 = vst [vmem:[%s221 + $0x2b8] sm:$0xff] %v2677
      %2742 = vst [vmem:[%s221 + $0x2d0] sm:$0xff] %v2678
      %2743 = vst [vmem:[%s221 + $0x2d8] sm:$0xff] %v2679
      %2744 = vst [vmem:[%s221 + $0x2f0] sm:$0xff] %v2680
      %2745 = vst [vmem:[%s221 + $0x2f8] sm:$0xff] %v2681
      %2746 = vst [vmem:[%s221 + $0x310] sm:$0xff] %v2682
      %2747 = vst [vmem:[%s221 + $0x318] sm:$0xff] %v2683
      %2748 = vst [vmem:[%s221 + $0x330] sm:$0xff] %v2684
      %2749 = vst [vmem:[%s221 + $0x338] sm:$0xff] %v2685
      %2750 = vst [vmem:[%s221 + $0x350] sm:$0xff] %v2686
      %2751 = vst [vmem:[%s221 + $0x358] sm:$0xff] %v2687
      %2752 = vst [vmem:[%s221 + $0x370] sm:$0xff] %v2688
      %2753 = vst [vmem:[%s221 + $0x378] sm:$0xff] %v2689
      %2754 = vst [vmem:[%s221 + $0x390] sm:$0xff] %v2690
      %2755 = vst [vmem:[%s221 + $0x398] sm:$0xff] %v2691
      %2756 = vst [vmem:[%s221 + $0x3b0] sm:$0xff] %v2692
      %2757 = vst [vmem:[%s221 + $0x3b8] sm:$0xff] %v2693
      %2758 = vst [vmem:[%s221 + $0x3d0] sm:$0xff] %v2694
      %2759 = vst [vmem:[%s221 + $0x3d8] sm:$0xff] %v2695
      %2760 = vst [vmem:[%s221 + $0x3f0] sm:$0xff] %v2696
      %2761 = vst [vmem:[%s221 + $0x3f8] sm:$0xff] %v2697
      %s2762 = smul.u32 32, %s20
      %p2763 = scmp.lt.s32.totalorder %s19, 1
      %s2764 = scalar_select %p2763, %s19, 1
      %p2765 = scmp.lt.s32.totalorder %s2762, 31
      %s2766 = scalar_select %p2765, %s2762, 31
      %s2767 = smul.addr %s2766, 4
      %s2768 = smul.addr %s2764, 128
      %s2769 = sadd.s32 %s2767, %s2768
      %s2770 = smul.addr %s2769, 8
      %s2771 = scalar_lea.vmem %s4, %s2770
      // Predicated region
      $region37: #{conv_transpose_silu_relu.1} parent=35 // pred_check
        %p2772 = pneg %p136
      $region38: #{conv_transpose_silu_relu.1} parent=35 // pred_check_branch
        %2774 = sbr.rel (%p2772) target = $region40
      $region39: #{conv_transpose_silu_relu.1} parent=35 // pred_region
        %s2775 = smul.u32 32, %s20
      $region40: #{conv_transpose_silu_relu.1} parent=35 // pred_fallthru
        _
    $region36: #{conv_transpose_silu_relu.1} parent=5 // pred_fallthru
      _
    %p2776 = scmp.le.s32.totalorder 2, %s10
    // Predicated region
    $region41: #{conv_transpose_silu_relu.1} parent=5 // pred_check
      %p2777 = pneg %p2776
    $region42: #{conv_transpose_silu_relu.1} parent=5 // pred_check_branch
      %2779 = sbr.rel (%p2777) target = $region44
    $region43: #{conv_transpose_silu_relu.1} parent=5 // pred_region
      %s2780 = ssub.s32 %s10, 2
      // Predicated region
      $region45: #{conv_transpose_silu_relu.1} parent=43 // pred_check
        %p2781 = pneg %p142
      $region46: #{conv_transpose_silu_relu.1} parent=43 // pred_check_branch
        %2783 = sbr.rel (%p2781) target = $region48
      $region47: #{conv_transpose_silu_relu.1} parent=43 // pred_region
        %s2784 = smul.u32 32, %s22
        %p2785 = scmp.lt.s32.totalorder %s21, 1
        %s2786 = scalar_select %p2785, %s21, 1
        %p2787 = scmp.lt.s32.totalorder %s2784, 31
        %s2788 = scalar_select %p2787, %s2784, 31
        %s2789 = smul.addr %s2788, 4
        %s2790 = smul.addr %s2786, 128
        %s2791 = sadd.s32 %s2789, %s2790
        %s2792 = smul.addr %s2791, 8
        %s2793 = scalar_lea.vmem %s4, %s2792
      $region48: #{conv_transpose_silu_relu.1} parent=43 // pred_fallthru
        _
    $region44: #{conv_transpose_silu_relu.1} parent=5 // pred_fallthru
      _
  $region6: #{conv_transpose_silu_relu.1} parent=0 // loop_footer
    %s14 = sadd.s32 1, %s10
  $region7: #{conv_transpose_silu_relu.1} parent=0 // loop_footer_branch
    %9 = sbr.rel target = $region3
  $region8: #{conv_transpose_silu_relu.1} parent=0 // loop_exit
    _

</llo_original>
